<compile_context>
chip_gen: v5e
topology: v5e:2x2
jax: 0.10.0
libtpu: 0.0.40
codegen_flags: <defaults>
</compile_context>

<pallas_src>
import math
import functools

import jax
import jax.numpy as jnp
from jax.experimental import pallas as pl
from jax.experimental.pallas import tpu as pltpu


# --------------------------------------------------------------------------
# Shared math
# --------------------------------------------------------------------------
def _layer_norm(x, gamma, beta, eps=1e-5):
    mean = jnp.mean(x, axis=-1, keepdims=True)
    var = jnp.mean((x - mean) ** 2, axis=-1, keepdims=True)
    return (x - mean) * jax.lax.rsqrt(var + eps) * gamma + beta


# --------------------------------------------------------------------------
# Fused kernel: all layers + pool + fc in one invocation (no grid)
# --------------------------------------------------------------------------
def fused_workspace_kernel(content_ref, phase_ref,
                           qkvw_ref, qkvb_ref, ow_ref, ob_ref, ps_ref,
                           ln1g_ref, ln1b_ref, w1_ref, b1_ref, w2_ref, b2_ref,
                           ln2g_ref, ln2b_ref, fcw_ref, fcb_ref,
                           out_ref, pooled_ref, attn_ref,
                           *, B, k, nhead, head_dim, num_layers):
    D = nhead * head_dim
    N = B * k
    f32 = jnp.float32
    bf16 = jnp.bfloat16

    c2 = content_ref[...]                                     # (N, D) f32 activations

    # ---- phase-similarity bias: computed ONCE, reused by every layer ----
    ph = phase_ref[...]                                       # (B, k, P)
    norm = jnp.sqrt(jnp.sum(ph * ph, axis=-1, keepdims=True))
    ph_n = ph / jnp.maximum(norm, 1e-12)                      # F.normalize(p=2, eps=1e-12)
    phase_bias = jnp.einsum("bqp,bkp->bqk", ph_n, ph_n,
                            preferred_element_type=f32)       # (B, k, k)
    # Broadcast once into the (nhead*B) attention batch axis, row order (h, b).
    phase_bias_hb = jnp.concatenate([phase_bias] * nhead, axis=0)   # (nhead*B, k, k)

    # Shared FFN / LayerNorm params (loaded once, reused every layer).
    ln1g, ln1b = ln1g_ref[...], ln1b_ref[...]
    ln2g, ln2b = ln2g_ref[...], ln2b_ref[...]
    w1, b1 = w1_ref[...], b1_ref[...]                          # w1/w2 are bf16
    w2, b2 = w2_ref[...], b2_ref[...]

    for l in range(num_layers):                                # static unroll (L small)
        # ---- fused Q|K|V projection: ONE bf16 MXU matmul, f32 accumulation ----
        qkv = jnp.dot(c2.astype(bf16), qkvw_ref[l],
                      preferred_element_type=f32) + qkvb_ref[l]        # (N, 3D) f32

        def heads_to_batch(off):
            # (N, hd) lane slices -> (B, k, hd) -> stack heads on the leading
            # (batch) axis: (nhead*B, k, hd), row order (h, b).
            return jnp.concatenate(
                [qkv[:, off + h * head_dim: off + (h + 1) * head_dim]
                 .reshape(B, k, head_dim) for h in range(nhead)], axis=0)

        qh = heads_to_batch(0)          # 1/sqrt(head_dim) already folded into weights
        kh = heads_to_batch(D)
        vh = heads_to_batch(2 * D)

        scale = ps_ref[l]                                      # scalar read from SMEM

        # ---- batched attention over all heads at once ----
        logits = jnp.einsum("bqd,bkd->bqk", qh.astype(bf16), kh.astype(bf16),
                            preferred_element_type=f32)        # (nhead*B, k, k)
        logits = logits + scale * phase_bias_hb

        m = jnp.max(logits, axis=-1, keepdims=True)
        e = jnp.exp(logits - m)
        w = e * pl.reciprocal(jnp.sum(e, axis=-1, keepdims=True), approx=True)

        ctx = jnp.einsum("bqk,bkd->bqd", w.astype(bf16), vh.astype(bf16),
                         preferred_element_type=f32)           # (nhead*B, k, hd)

        # Merge heads back to lanes (head-major, matching .transpose(1,2).view),
        # then ONE full-D out-projection matmul.
        ctx_cat = jnp.concatenate([ctx[h * B:(h + 1) * B] for h in range(nhead)],
                                  axis=-1).reshape(N, D)       # (N, D)
        proj = jnp.dot(ctx_cat.astype(bf16), ow_ref[l],
                       preferred_element_type=f32) + ob_ref[l]

        # ---- lane-dense attention-weight slab: (B, nhead*k*k), lanes = (h, q, t) ----
        w_qk = jnp.concatenate([w[:, q, :] for q in range(k)], axis=-1)     # (nhead*B, k*k)
        attn_ref[l] = jnp.concatenate(
            [w_qk[h * B:(h + 1) * B, :] for h in range(nhead)], axis=-1)    # (B, nhead*k*k)

        # residual + norm1, shared FFN (Linear->ReLU->Linear), residual + norm2
        x2 = _layer_norm(c2 + proj, ln1g, ln1b)
        h1 = jnp.maximum(
            jnp.dot(x2.astype(bf16), w1, preferred_element_type=f32) + b1, 0.0)
        f2 = jnp.dot(h1.astype(bf16), w2, preferred_element_type=f32) + b2
        c2 = _layer_norm(x2 + f2, ln2g, ln2b)

    # ---- mean-pool over sequence + final Linear ----
    pooled = jnp.mean(c2.reshape(B, k, D), axis=1)             # (B, D)
    pooled_ref[...] = pooled
    out_ref[...] = jnp.dot(pooled.astype(bf16), fcw_ref[...],
                           preferred_element_type=f32) + fcb_ref[...]


# --------------------------------------------------------------------------
# Wrapper
# --------------------------------------------------------------------------
def enhanced_workspace_forward(x_with_phase, params, *, d_model, nhead):
    B, k, feat = x_with_phase.shape
    D = d_model
    head_dim = D // nhead
    L = params["qw"].shape[0]
    H = params["w1"].shape[-1]
    O = params["fcw"].shape[-1]
    P = feat - D
    N = B * k
    bf16 = jnp.bfloat16

    content2 = x_with_phase[..., :D].reshape(N, D).astype(jnp.float32)
    phase = x_with_phase[..., D:].astype(jnp.float32)

    # Fused QKV weights with the 1/sqrt(head_dim) scale folded into the Q slice.
    inv = 1.0 / math.sqrt(head_dim)
    qkvw = jnp.concatenate(
        [params["qw"] * inv, params["kw"], params["vw"]], axis=-1).astype(bf16)  # (L,D,3D)
    qkvb = jnp.concatenate(
        [params["qb"] * inv, params["kb"], params["vb"]], axis=-1)               # (L,1,3D) f32

    weight_args = [
        qkvw, qkvb,
        params["ow"].astype(bf16), params["ob"], params["ps"],
        params["ln1g"], params["ln1b"],
        params["w1"].astype(bf16), params["b1"],
        params["w2"].astype(bf16), params["b2"],
        params["ln2g"], params["ln2b"],
        params["fcw"].astype(bf16), params["fcb"],
    ]

    vmem = pl.BlockSpec(memory_space=pltpu.MemorySpace.VMEM)
    smem = pl.BlockSpec(memory_space=pltpu.MemorySpace.SMEM)
    in_specs = ([vmem, vmem]                                    # content, phase
                + [vmem, vmem, vmem, vmem, smem]                # qkvw, qkvb, ow, ob, ps
                + [vmem] * 10)                                  # ln1, w1/b1, w2/b2, ln2, fc

    out_shape = (jax.ShapeDtypeStruct((B, O), jnp.float32),
                 jax.ShapeDtypeStruct((B, D), jnp.float32),
                 jax.ShapeDtypeStruct((L, B, nhead * k * k), jnp.float32))
    out_specs = (vmem, vmem, vmem)

    # Advisory cost estimate so XLA schedules around the fused call sensibly.
    flops = (L * (2 * N * D * 3 * D                 # fused QKV
                  + 4 * B * nhead * k * k * head_dim  # logits + context
                  + 2 * N * D * D                     # out-projection
                  + 4 * N * D * H)                    # FFN (two matmuls)
             + 2 * B * k * k * P + 2 * B * D * O)
    transcendentals = L * (nhead * B * k * k + 4 * N) + B * k
    bytes_accessed = int(
        sum(int(a.size) * a.dtype.itemsize for a in [content2, phase] + weight_args)
        + sum(math.prod(s.shape) * 4 for s in out_shape))

    fn = pl.pallas_call(
        functools.partial(fused_workspace_kernel, B=B, k=k, nhead=nhead,
                          head_dim=head_dim, num_layers=L),
        in_specs=in_specs,
        out_specs=out_specs,
        out_shape=out_shape,
        compiler_params=pltpu.CompilerParams(vmem_limit_bytes=32 * 1024 * 1024),
        cost_estimate=pl.CostEstimate(flops=int(flops),
                                      transcendentals=int(transcendentals),
                                      bytes_accessed=bytes_accessed),
    )
    output, pooled, attn_flat = fn(content2, phase, *weight_args)

    # (L, B, nhead*k*k) with lanes ordered (h, q, t) -> per-layer (B, nhead, k, k)
    attn = attn_flat.reshape(L, B, nhead, k, k)
    attn_all = [attn[l] for l in range(L)]
    return output, pooled, attn_all


# --------------------------------------------------------------------------
# Deterministic parameter init (matches the module's parameter structure:
# per-layer attention projections + phase_scale; SHARED ffn/norm1/norm2/fc).
# --------------------------------------------------------------------------
def init_linear(key, in_dim, out_dim):
    k1, k2 = jax.random.split(key)
    bound = 1.0 / math.sqrt(in_dim)
    w = jax.random.uniform(k1, (in_dim, out_dim), jnp.float32, -bound, bound)
    b = jax.random.uniform(k2, (1, out_dim), jnp.float32, -bound, bound)
    return w, b


def init_params(key, d_model, hidden_dim, output_dim, num_layers,
                initial_phase_scale=1.0):
    per = {n: [] for n in ("qw", "qb", "kw", "kb", "vw", "vb", "ow", "ob")}
    for _ in range(num_layers):
        keys = jax.random.split(key, 5)
        key = keys[-1]
        for name, kk in zip(("q", "k", "v", "o"), keys[:4]):
            w, b = init_linear(kk, d_model, d_model)
            per[name + "w"].append(w)
            per[name + "b"].append(b)
    params = {n: jnp.stack(v) for n, v in per.items()}          # (L,D,D)/(L,1,D)

    k1, k2, k3 = jax.random.split(key, 3)
    w1, b1 = init_linear(k1, d_model, hidden_dim)
    w2, b2 = init_linear(k2, hidden_dim, d_model)
    fcw, fcb = init_linear(k3, d_model, output_dim)
    params.update(
        ps=jnp.full((num_layers,), initial_phase_scale, jnp.float32),
        ln1g=jnp.ones((1, d_model), jnp.float32),
        ln1b=jnp.zeros((1, d_model), jnp.float32),
        w1=w1, b1=b1, w2=w2, b2=b2,
        ln2g=jnp.ones((1, d_model), jnp.float32),
        ln2b=jnp.zeros((1, d_model), jnp.float32),
        fcw=fcw, fcb=fcb,
    )
    return params


# --------------------------------------------------------------------------
# Pure-JAX f32 reference (same math, no Pallas) for a sanity check
# --------------------------------------------------------------------------
def reference_forward(x_with_phase, params, *, d_model, nhead):
    D = d_model
    hd = D // nhead
    content = x_with_phase[..., :D]
    phase = x_with_phase[..., D:]
    B, k, _ = content.shape
    L = params["qw"].shape[0]

    pn = phase / jnp.maximum(
        jnp.sqrt(jnp.sum(phase * phase, axis=-1, keepdims=True)), 1e-12)
    pb = jnp.einsum("bqp,bkp->bqk", pn, pn)

    attn_all = []
    for l in range(L):
        q = content @ params["qw"][l] + params["qb"][l]
        kk = content @ params["kw"][l] + params["kb"][l]
        v = content @ params["vw"][l] + params["vb"][l]
        sh = lambda x: x.reshape(B, k, nhead, hd).transpose(0, 2, 1, 3)
        qh, kh, vh = sh(q) / math.sqrt(hd), sh(kk), sh(v)
        logits = jnp.einsum("bhqd,bhkd->bhqk", qh, kh) + params["ps"][l] * pb[:, None]
        w = jax.nn.softmax(logits, axis=-1)
        attn_all.append(w)
        ao = jnp.einsum("bhqk,bhkd->bhqd", w, vh).transpose(0, 2, 1, 3).reshape(B, k, D)
        out = ao @ params["ow"][l] + params["ob"][l]
        content = _layer_norm(content + out, params["ln1g"], params["ln1b"])
        ffn = (jnp.maximum(content @ params["w1"] + params["b1"], 0.0)
               @ params["w2"] + params["b2"])
        content = _layer_norm(content + ffn, params["ln2g"], params["ln2b"])

    pooled = content.mean(axis=1)
    output = pooled @ params["fcw"] + params["fcb"]
    return output, pooled, attn_all


# --------------------------------------------------------------------------
if __name__ == "__main__":
    B, k = 2, 8
    input_dim, hidden_dim, output_dim = 32, 64, 8
    nhead, phase_dim, num_layers = 4, 16, 2

    root = jax.random.PRNGKey(0)
    kx, kp = jax.random.split(root)
    x_with_phase = jax.random.normal(kx, (B, k, input_dim + phase_dim), jnp.float32)
    params = init_params(kp, input_dim, hidden_dim, output_dim, num_layers,
                         initial_phase_scale=1.0)

    output, pooled, attn_all = enhanced_workspace_forward(
        x_with_phase, params, d_model=input_dim, nhead=nhead)
    output = jax.block_until_ready(output)
    pooled = jax.block_until_ready(pooled)
    attn_all = [jax.block_until_ready(a) for a in attn_all]

    # sanity check vs pure-JAX f32 reference (kernel uses bf16 MXU operands with
    # f32 accumulation -> loosened tolerances)
    ref_out, ref_pooled, ref_attn = reference_forward(
        x_with_phase, params, d_model=input_dim, nhead=nhead)

    assert output.shape == (B, output_dim)
    assert pooled.shape == (B, input_dim)
    assert len(attn_all) == num_layers
    assert attn_all[0].shape == (B, nhead, k, k)
    assert jnp.allclose(output, ref_out, atol=5e-2, rtol=5e-2)
    assert jnp.allclose(pooled, ref_pooled, atol=5e-2, rtol=5e-2)
    for a, ra in zip(attn_all, ref_attn):
        assert jnp.allclose(a, ra, atol=2e-2, rtol=2e-2)

    print("KERNEL_OK")
</pallas_src>

<mosaic_0001>
module attributes {stable_mosaic.version = 11 : i64} {
  func.func @fused_workspace_kernel(%arg0: memref<16x32xf32, #tpu.memory_space<vmem>>, %arg1: memref<2x8x16xf32, #tpu.memory_space<vmem>>, %arg2: memref<2x32x96xbf16, #tpu.memory_space<vmem>>, %arg3: memref<2x1x96xf32, #tpu.memory_space<vmem>>, %arg4: memref<2x32x32xbf16, #tpu.memory_space<vmem>>, %arg5: memref<2x1x32xf32, #tpu.memory_space<vmem>>, %arg6: memref<2xf32, #tpu.memory_space<smem>>, %arg7: memref<1x32xf32, #tpu.memory_space<vmem>>, %arg8: memref<1x32xf32, #tpu.memory_space<vmem>>, %arg9: memref<32x64xbf16, #tpu.memory_space<vmem>>, %arg10: memref<1x64xf32, #tpu.memory_space<vmem>>, %arg11: memref<64x32xbf16, #tpu.memory_space<vmem>>, %arg12: memref<1x32xf32, #tpu.memory_space<vmem>>, %arg13: memref<1x32xf32, #tpu.memory_space<vmem>>, %arg14: memref<1x32xf32, #tpu.memory_space<vmem>>, %arg15: memref<32x8xbf16, #tpu.memory_space<vmem>>, %arg16: memref<1x8xf32, #tpu.memory_space<vmem>>, %arg17: memref<2x8xf32, #tpu.memory_space<vmem>>, %arg18: memref<2x32xf32, #tpu.memory_space<vmem>>, %arg19: memref<2x2x256xf32, #tpu.memory_space<vmem>>) attributes {dimension_semantics = [], scalar_prefetch = 0 : i64, scratch_operands = 0 : i64, tpu.core_type = #tpu.core_type<tc>} {
    %c0 = arith.constant 0 : index
    %c0_0 = arith.constant 0 : index
    %0 = vector.load %arg0[%c0, %c0_0] : memref<16x32xf32, #tpu.memory_space<vmem>>, vector<16x32xf32>
    %c0_1 = arith.constant 0 : index
    %c0_2 = arith.constant 0 : index
    %c0_3 = arith.constant 0 : index
    %1 = vector.load %arg1[%c0_1, %c0_2, %c0_3] : memref<2x8x16xf32, #tpu.memory_space<vmem>>, vector<2x8x16xf32>
    %2 = arith.mulf %1, %1 : vector<2x8x16xf32>
    %cst = arith.constant dense<0.000000e+00> : vector<2x8xf32>
    %3 = vector.multi_reduction <add>, %2, %cst [2] : vector<2x8x16xf32> to vector<2x8xf32>
    %4 = vector.shape_cast %3 : vector<2x8xf32> to vector<2x8x1xf32>
    %5 = math.sqrt %4 : vector<2x8x1xf32>
    %cst_4 = arith.constant 9.99999996E-13 : f32
    %6 = vector.broadcast %cst_4 : f32 to vector<2x8x1xf32>
    %7 = arith.maximumf %5, %6 : vector<2x8x1xf32>
    %8 = vector.broadcast %7 : vector<2x8x1xf32> to vector<2x8x16xf32>
    %9 = arith.divf %1, %8 : vector<2x8x16xf32>
    "tpu.trace_start"() <{level = 10 : i32, message = "bqp,bkp->bqk"}> : () -> ()
    %cst_5 = arith.constant dense<0.000000e+00> : vector<2x8x8xf32>
    %10 = tpu.matmul %9, %9, %cst_5 {dimension_numbers = #tpu.dot_dimension_numbers<[2], [2], [1], [1], [0, 0, 0, 1, 1, 1], [0], [0]>} : vector<2x8x16xf32>, vector<2x8x16xf32>, vector<2x8x8xf32> -> vector<2x8x8xf32>
    "tpu.trace_stop"() : () -> ()
    %11 = tpu.concatenate %10, %10, %10, %10 in 0 : vector<2x8x8xf32>, vector<2x8x8xf32>, vector<2x8x8xf32>, vector<2x8x8xf32> -> vector<8x8x8xf32>
    %c0_6 = arith.constant 0 : index
    %c0_7 = arith.constant 0 : index
    %12 = vector.load %arg7[%c0_6, %c0_7] : memref<1x32xf32, #tpu.memory_space<vmem>>, vector<1x32xf32>
    %c0_8 = arith.constant 0 : index
    %c0_9 = arith.constant 0 : index
    %13 = vector.load %arg8[%c0_8, %c0_9] : memref<1x32xf32, #tpu.memory_space<vmem>>, vector<1x32xf32>
    %c0_10 = arith.constant 0 : index
    %c0_11 = arith.constant 0 : index
    %14 = vector.load %arg13[%c0_10, %c0_11] : memref<1x32xf32, #tpu.memory_space<vmem>>, vector<1x32xf32>
    %c0_12 = arith.constant 0 : index
    %c0_13 = arith.constant 0 : index
    %15 = vector.load %arg14[%c0_12, %c0_13] : memref<1x32xf32, #tpu.memory_space<vmem>>, vector<1x32xf32>
    %c0_14 = arith.constant 0 : index
    %c0_15 = arith.constant 0 : index
    %16 = vector.load %arg9[%c0_14, %c0_15] : memref<32x64xbf16, #tpu.memory_space<vmem>>, vector<32x64xbf16>
    %c0_16 = arith.constant 0 : index
    %c0_17 = arith.constant 0 : index
    %17 = vector.load %arg10[%c0_16, %c0_17] : memref<1x64xf32, #tpu.memory_space<vmem>>, vector<1x64xf32>
    %c0_18 = arith.constant 0 : index
    %c0_19 = arith.constant 0 : index
    %18 = vector.load %arg11[%c0_18, %c0_19] : memref<64x32xbf16, #tpu.memory_space<vmem>>, vector<64x32xbf16>
    %c0_20 = arith.constant 0 : index
    %c0_21 = arith.constant 0 : index
    %19 = vector.load %arg12[%c0_20, %c0_21] : memref<1x32xf32, #tpu.memory_space<vmem>>, vector<1x32xf32>
    %20 = arith.truncf %0 : vector<16x32xf32> to vector<16x32xbf16>
    %c0_22 = arith.constant 0 : index
    %c0_23 = arith.constant 0 : index
    %c0_24 = arith.constant 0 : index
    %21 = vector.load %arg2[%c0_22, %c0_23, %c0_24] : memref<2x32x96xbf16, #tpu.memory_space<vmem>>, vector<1x32x96xbf16>
    %22 = vector.shape_cast %21 : vector<1x32x96xbf16> to vector<32x96xbf16>
    %cst_25 = arith.constant dense<0.000000e+00> : vector<16x96xf32>
    %23 = tpu.matmul %20, %22, %cst_25 {dimension_numbers = #tpu.dot_dimension_numbers<[1], [0], [0], [1], [0, 0, 1, 1], [], []>} : vector<16x32xbf16>, vector<32x96xbf16>, vector<16x96xf32> -> vector<16x96xf32>
    %c0_26 = arith.constant 0 : index
    %c0_27 = arith.constant 0 : index
    %c0_28 = arith.constant 0 : index
    %24 = vector.load %arg3[%c0_26, %c0_27, %c0_28] : memref<2x1x96xf32, #tpu.memory_space<vmem>>, vector<1x1x96xf32>
    %25 = vector.shape_cast %24 : vector<1x1x96xf32> to vector<1x96xf32>
    %26 = vector.broadcast %25 : vector<1x96xf32> to vector<16x96xf32>
    %27 = arith.addf %23, %26 : vector<16x96xf32>
    %28 = vector.extract_strided_slice %27 {offsets = [0, 0], sizes = [16, 8], strides = [1, 1]} : vector<16x96xf32> to vector<16x8xf32>
    %29 = vector.shape_cast %28 : vector<16x8xf32> to vector<2x8x8xf32>
    %30 = vector.extract_strided_slice %27 {offsets = [0, 8], sizes = [16, 8], strides = [1, 1]} : vector<16x96xf32> to vector<16x8xf32>
    %31 = vector.shape_cast %30 : vector<16x8xf32> to vector<2x8x8xf32>
    %32 = vector.extract_strided_slice %27 {offsets = [0, 16], sizes = [16, 8], strides = [1, 1]} : vector<16x96xf32> to vector<16x8xf32>
    %33 = vector.shape_cast %32 : vector<16x8xf32> to vector<2x8x8xf32>
    %34 = vector.extract_strided_slice %27 {offsets = [0, 24], sizes = [16, 8], strides = [1, 1]} : vector<16x96xf32> to vector<16x8xf32>
    %35 = vector.shape_cast %34 : vector<16x8xf32> to vector<2x8x8xf32>
    %36 = tpu.concatenate %29, %31, %33, %35 in 0 : vector<2x8x8xf32>, vector<2x8x8xf32>, vector<2x8x8xf32>, vector<2x8x8xf32> -> vector<8x8x8xf32>
    %37 = vector.extract_strided_slice %27 {offsets = [0, 32], sizes = [16, 8], strides = [1, 1]} : vector<16x96xf32> to vector<16x8xf32>
    %38 = vector.shape_cast %37 : vector<16x8xf32> to vector<2x8x8xf32>
    %39 = vector.extract_strided_slice %27 {offsets = [0, 40], sizes = [16, 8], strides = [1, 1]} : vector<16x96xf32> to vector<16x8xf32>
    %40 = vector.shape_cast %39 : vector<16x8xf32> to vector<2x8x8xf32>
    %41 = vector.extract_strided_slice %27 {offsets = [0, 48], sizes = [16, 8], strides = [1, 1]} : vector<16x96xf32> to vector<16x8xf32>
    %42 = vector.shape_cast %41 : vector<16x8xf32> to vector<2x8x8xf32>
    %43 = vector.extract_strided_slice %27 {offsets = [0, 56], sizes = [16, 8], strides = [1, 1]} : vector<16x96xf32> to vector<16x8xf32>
    %44 = vector.shape_cast %43 : vector<16x8xf32> to vector<2x8x8xf32>
    %45 = tpu.concatenate %38, %40, %42, %44 in 0 : vector<2x8x8xf32>, vector<2x8x8xf32>, vector<2x8x8xf32>, vector<2x8x8xf32> -> vector<8x8x8xf32>
    %46 = vector.extract_strided_slice %27 {offsets = [0, 64], sizes = [16, 8], strides = [1, 1]} : vector<16x96xf32> to vector<16x8xf32>
    %47 = vector.shape_cast %46 : vector<16x8xf32> to vector<2x8x8xf32>
    %48 = vector.extract_strided_slice %27 {offsets = [0, 72], sizes = [16, 8], strides = [1, 1]} : vector<16x96xf32> to vector<16x8xf32>
    %49 = vector.shape_cast %48 : vector<16x8xf32> to vector<2x8x8xf32>
    %50 = vector.extract_strided_slice %27 {offsets = [0, 80], sizes = [16, 8], strides = [1, 1]} : vector<16x96xf32> to vector<16x8xf32>
    %51 = vector.shape_cast %50 : vector<16x8xf32> to vector<2x8x8xf32>
    %52 = vector.extract_strided_slice %27 {offsets = [0, 88], sizes = [16, 8], strides = [1, 1]} : vector<16x96xf32> to vector<16x8xf32>
    %53 = vector.shape_cast %52 : vector<16x8xf32> to vector<2x8x8xf32>
    %54 = tpu.concatenate %47, %49, %51, %53 in 0 : vector<2x8x8xf32>, vector<2x8x8xf32>, vector<2x8x8xf32>, vector<2x8x8xf32> -> vector<8x8x8xf32>
    %c0_29 = arith.constant 0 : index
    %55 = memref.load %arg6[%c0_29] : memref<2xf32, #tpu.memory_space<smem>>
    %56 = arith.truncf %36 : vector<8x8x8xf32> to vector<8x8x8xbf16>
    %57 = arith.truncf %45 : vector<8x8x8xf32> to vector<8x8x8xbf16>
    "tpu.trace_start"() <{level = 10 : i32, message = "bqd,bkd->bqk"}> : () -> ()
    %cst_30 = arith.constant dense<0.000000e+00> : vector<8x8x8xf32>
    %58 = tpu.matmul %56, %57, %cst_30 {dimension_numbers = #tpu.dot_dimension_numbers<[2], [2], [1], [1], [0, 0, 0, 1, 1, 1], [0], [0]>} : vector<8x8x8xbf16>, vector<8x8x8xbf16>, vector<8x8x8xf32> -> vector<8x8x8xf32>
    "tpu.trace_stop"() : () -> ()
    %59 = vector.broadcast %55 : f32 to vector<8x8x8xf32>
    %60 = arith.mulf %59, %11 : vector<8x8x8xf32>
    %61 = arith.addf %58, %60 : vector<8x8x8xf32>
    %cst_31 = arith.constant dense<0xFF800000> : vector<8x8xf32>
    %62 = vector.multi_reduction <maximumf>, %61, %cst_31 [2] : vector<8x8x8xf32> to vector<8x8xf32>
    %63 = vector.shape_cast %62 : vector<8x8xf32> to vector<8x8x1xf32>
    %64 = vector.broadcast %63 : vector<8x8x1xf32> to vector<8x8x8xf32>
    %65 = arith.subf %61, %64 : vector<8x8x8xf32>
    %66 = math.exp %65 : vector<8x8x8xf32>
    %cst_32 = arith.constant dense<0.000000e+00> : vector<8x8xf32>
    %67 = vector.multi_reduction <add>, %66, %cst_32 [2] : vector<8x8x8xf32> to vector<8x8xf32>
    %68 = vector.shape_cast %67 : vector<8x8xf32> to vector<8x8x1xf32>
    %69 = tpu.reciprocal %68 {approx = true} : vector<8x8x1xf32> -> vector<8x8x1xf32>
    %70 = vector.broadcast %69 : vector<8x8x1xf32> to vector<8x8x8xf32>
    %71 = arith.mulf %66, %70 : vector<8x8x8xf32>
    %72 = arith.truncf %71 : vector<8x8x8xf32> to vector<8x8x8xbf16>
    %73 = arith.truncf %54 : vector<8x8x8xf32> to vector<8x8x8xbf16>
    "tpu.trace_start"() <{level = 10 : i32, message = "bqk,bkd->bqd"}> : () -> ()
    %cst_33 = arith.constant dense<0.000000e+00> : vector<8x8x8xf32>
    %74 = tpu.matmul %72, %73, %cst_33 {dimension_numbers = #tpu.dot_dimension_numbers<[2], [1], [1], [2], [0, 0, 0, 1, 1, 2], [0], [0]>} : vector<8x8x8xbf16>, vector<8x8x8xbf16>, vector<8x8x8xf32> -> vector<8x8x8xf32>
    "tpu.trace_stop"() : () -> ()
    %75 = vector.extract_strided_slice %74 {offsets = [0, 0, 0], sizes = [2, 8, 8], strides = [1, 1, 1]} : vector<8x8x8xf32> to vector<2x8x8xf32>
    %76 = vector.extract_strided_slice %74 {offsets = [2, 0, 0], sizes = [2, 8, 8], strides = [1, 1, 1]} : vector<8x8x8xf32> to vector<2x8x8xf32>
    %77 = vector.extract_strided_slice %74 {offsets = [4, 0, 0], sizes = [2, 8, 8], strides = [1, 1, 1]} : vector<8x8x8xf32> to vector<2x8x8xf32>
    %78 = vector.extract_strided_slice %74 {offsets = [6, 0, 0], sizes = [2, 8, 8], strides = [1, 1, 1]} : vector<8x8x8xf32> to vector<2x8x8xf32>
    %79 = tpu.concatenate %75, %76, %77, %78 in 2 : vector<2x8x8xf32>, vector<2x8x8xf32>, vector<2x8x8xf32>, vector<2x8x8xf32> -> vector<2x8x32xf32>
    %80 = vector.shape_cast %79 : vector<2x8x32xf32> to vector<16x32xf32>
    %81 = arith.truncf %80 : vector<16x32xf32> to vector<16x32xbf16>
    %c0_34 = arith.constant 0 : index
    %c0_35 = arith.constant 0 : index
    %c0_36 = arith.constant 0 : index
    %82 = vector.load %arg4[%c0_34, %c0_35, %c0_36] : memref<2x32x32xbf16, #tpu.memory_space<vmem>>, vector<1x32x32xbf16>
    %83 = vector.shape_cast %82 : vector<1x32x32xbf16> to vector<32x32xbf16>
    %cst_37 = arith.constant dense<0.000000e+00> : vector<16x32xf32>
    %84 = tpu.matmul %81, %83, %cst_37 {dimension_numbers = #tpu.dot_dimension_numbers<[1], [0], [0], [1], [0, 0, 1, 1], [], []>} : vector<16x32xbf16>, vector<32x32xbf16>, vector<16x32xf32> -> vector<16x32xf32>
    %c0_38 = arith.constant 0 : index
    %c0_39 = arith.constant 0 : index
    %c0_40 = arith.constant 0 : index
    %85 = vector.load %arg5[%c0_38, %c0_39, %c0_40] : memref<2x1x32xf32, #tpu.memory_space<vmem>>, vector<1x1x32xf32>
    %86 = vector.shape_cast %85 : vector<1x1x32xf32> to vector<1x32xf32>
    %87 = vector.broadcast %86 : vector<1x32xf32> to vector<16x32xf32>
    %88 = arith.addf %84, %87 : vector<16x32xf32>
    %89 = vector.extract_strided_slice %71 {offsets = [0, 0, 0], sizes = [8, 1, 8], strides = [1, 1, 1]} : vector<8x8x8xf32> to vector<8x1x8xf32>
    %90 = vector.shape_cast %89 : vector<8x1x8xf32> to vector<8x8xf32>
    %91 = vector.extract_strided_slice %71 {offsets = [0, 1, 0], sizes = [8, 1, 8], strides = [1, 1, 1]} : vector<8x8x8xf32> to vector<8x1x8xf32>
    %92 = vector.shape_cast %91 : vector<8x1x8xf32> to vector<8x8xf32>
    %93 = vector.extract_strided_slice %71 {offsets = [0, 2, 0], sizes = [8, 1, 8], strides = [1, 1, 1]} : vector<8x8x8xf32> to vector<8x1x8xf32>
    %94 = vector.shape_cast %93 : vector<8x1x8xf32> to vector<8x8xf32>
    %95 = vector.extract_strided_slice %71 {offsets = [0, 3, 0], sizes = [8, 1, 8], strides = [1, 1, 1]} : vector<8x8x8xf32> to vector<8x1x8xf32>
    %96 = vector.shape_cast %95 : vector<8x1x8xf32> to vector<8x8xf32>
    %97 = vector.extract_strided_slice %71 {offsets = [0, 4, 0], sizes = [8, 1, 8], strides = [1, 1, 1]} : vector<8x8x8xf32> to vector<8x1x8xf32>
    %98 = vector.shape_cast %97 : vector<8x1x8xf32> to vector<8x8xf32>
    %99 = vector.extract_strided_slice %71 {offsets = [0, 5, 0], sizes = [8, 1, 8], strides = [1, 1, 1]} : vector<8x8x8xf32> to vector<8x1x8xf32>
    %100 = vector.shape_cast %99 : vector<8x1x8xf32> to vector<8x8xf32>
    %101 = vector.extract_strided_slice %71 {offsets = [0, 6, 0], sizes = [8, 1, 8], strides = [1, 1, 1]} : vector<8x8x8xf32> to vector<8x1x8xf32>
    %102 = vector.shape_cast %101 : vector<8x1x8xf32> to vector<8x8xf32>
    %103 = vector.extract_strided_slice %71 {offsets = [0, 7, 0], sizes = [8, 1, 8], strides = [1, 1, 1]} : vector<8x8x8xf32> to vector<8x1x8xf32>
    %104 = vector.shape_cast %103 : vector<8x1x8xf32> to vector<8x8xf32>
    %105 = tpu.concatenate %90, %92, %94, %96, %98, %100, %102, %104 in 1 : vector<8x8xf32>, vector<8x8xf32>, vector<8x8xf32>, vector<8x8xf32>, vector<8x8xf32>, vector<8x8xf32>, vector<8x8xf32>, vector<8x8xf32> -> vector<8x64xf32>
    %106 = vector.extract_strided_slice %105 {offsets = [0, 0], sizes = [2, 64], strides = [1, 1]} : vector<8x64xf32> to vector<2x64xf32>
    %107 = vector.extract_strided_slice %105 {offsets = [2, 0], sizes = [2, 64], strides = [1, 1]} : vector<8x64xf32> to vector<2x64xf32>
    %108 = vector.extract_strided_slice %105 {offsets = [4, 0], sizes = [2, 64], strides = [1, 1]} : vector<8x64xf32> to vector<2x64xf32>
    %109 = vector.extract_strided_slice %105 {offsets = [6, 0], sizes = [2, 64], strides = [1, 1]} : vector<8x64xf32> to vector<2x64xf32>
    %110 = tpu.concatenate %106, %107, %108, %109 in 1 : vector<2x64xf32>, vector<2x64xf32>, vector<2x64xf32>, vector<2x64xf32> -> vector<2x256xf32>
    %c0_41 = arith.constant 0 : index
    %c0_42 = arith.constant 0 : index
    %c0_43 = arith.constant 0 : index
    %111 = vector.load %arg19[%c0_41, %c0_42, %c0_43] : memref<2x2x256xf32, #tpu.memory_space<vmem>>, vector<1x2x256xf32>
    %112 = vector.shape_cast %111 : vector<1x2x256xf32> to vector<2x256xf32>
    %113 = vector.shape_cast %110 : vector<2x256xf32> to vector<1x2x256xf32>
    tpu.vector_store %arg19[%c0_41, %c0_42, %c0_43], %113 {strides = array<i32>} : memref<2x2x256xf32, #tpu.memory_space<vmem>>, vector<1x2x256xf32>,
    %114 = arith.addf %0, %88 : vector<16x32xf32>
    %cst_44 = arith.constant dense<0.000000e+00> : vector<16xf32>
    %115 = vector.multi_reduction <add>, %114, %cst_44 [1] : vector<16x32xf32> to vector<16xf32>
    %116 = vector.shape_cast %115 : vector<16xf32> to vector<16x1xf32>
    %cst_45 = arith.constant 3.200000e+01 : f32
    %117 = vector.broadcast %cst_45 : f32 to vector<16x1xf32>
    %118 = arith.divf %116, %117 : vector<16x1xf32>
    %119 = vector.broadcast %118 : vector<16x1xf32> to vector<16x32xf32>
    %120 = arith.subf %114, %119 : vector<16x32xf32>
    %121 = arith.mulf %120, %120 : vector<16x32xf32>
    %cst_46 = arith.constant dense<0.000000e+00> : vector<16xf32>
    %122 = vector.multi_reduction <add>, %121, %cst_46 [1] : vector<16x32xf32> to vector<16xf32>
    %123 = vector.shape_cast %122 : vector<16xf32> to vector<16x1xf32>
    %cst_47 = arith.constant 3.200000e+01 : f32
    %124 = vector.broadcast %cst_47 : f32 to vector<16x1xf32>
    %125 = arith.divf %123, %124 : vector<16x1xf32>
    %126 = vector.broadcast %118 : vector<16x1xf32> to vector<16x32xf32>
    %127 = arith.subf %114, %126 : vector<16x32xf32>
    %cst_48 = arith.constant 9.99999974E-6 : f32
    %128 = vector.broadcast %cst_48 : f32 to vector<16x1xf32>
    %129 = arith.addf %125, %128 : vector<16x1xf32>
    %130 = math.rsqrt %129 : vector<16x1xf32>
    %131 = vector.broadcast %130 : vector<16x1xf32> to vector<16x32xf32>
    %132 = arith.mulf %127, %131 : vector<16x32xf32>
    %133 = vector.broadcast %12 : vector<1x32xf32> to vector<16x32xf32>
    %134 = arith.mulf %132, %133 : vector<16x32xf32>
    %135 = vector.broadcast %13 : vector<1x32xf32> to vector<16x32xf32>
    %136 = arith.addf %134, %135 : vector<16x32xf32>
    %137 = arith.truncf %136 : vector<16x32xf32> to vector<16x32xbf16>
    %cst_49 = arith.constant dense<0.000000e+00> : vector<16x64xf32>
    %138 = tpu.matmul %137, %16, %cst_49 {dimension_numbers = #tpu.dot_dimension_numbers<[1], [0], [0], [1], [0, 0, 1, 1], [], []>} : vector<16x32xbf16>, vector<32x64xbf16>, vector<16x64xf32> -> vector<16x64xf32>
    %139 = vector.broadcast %17 : vector<1x64xf32> to vector<16x64xf32>
    %140 = arith.addf %138, %139 : vector<16x64xf32>
    %cst_50 = arith.constant 0.000000e+00 : f32
    %141 = vector.broadcast %cst_50 : f32 to vector<16x64xf32>
    %142 = arith.maximumf %140, %141 : vector<16x64xf32>
    %143 = arith.truncf %142 : vector<16x64xf32> to vector<16x64xbf16>
    %cst_51 = arith.constant dense<0.000000e+00> : vector<16x32xf32>
    %144 = tpu.matmul %143, %18, %cst_51 {dimension_numbers = #tpu.dot_dimension_numbers<[1], [0], [0], [1], [0, 0, 1, 1], [], []>} : vector<16x64xbf16>, vector<64x32xbf16>, vector<16x32xf32> -> vector<16x32xf32>
    %145 = vector.broadcast %19 : vector<1x32xf32> to vector<16x32xf32>
    %146 = arith.addf %144, %145 : vector<16x32xf32>
    %147 = arith.addf %136, %146 : vector<16x32xf32>
    %cst_52 = arith.constant dense<0.000000e+00> : vector<16xf32>
    %148 = vector.multi_reduction <add>, %147, %cst_52 [1] : vector<16x32xf32> to vector<16xf32>
    %149 = vector.shape_cast %148 : vector<16xf32> to vector<16x1xf32>
    %cst_53 = arith.constant 3.200000e+01 : f32
    %150 = vector.broadcast %cst_53 : f32 to vector<16x1xf32>
    %151 = arith.divf %149, %150 : vector<16x1xf32>
    %152 = vector.broadcast %151 : vector<16x1xf32> to vector<16x32xf32>
    %153 = arith.subf %147, %152 : vector<16x32xf32>
    %154 = arith.mulf %153, %153 : vector<16x32xf32>
    %cst_54 = arith.constant dense<0.000000e+00> : vector<16xf32>
    %155 = vector.multi_reduction <add>, %154, %cst_54 [1] : vector<16x32xf32> to vector<16xf32>
    %156 = vector.shape_cast %155 : vector<16xf32> to vector<16x1xf32>
    %cst_55 = arith.constant 3.200000e+01 : f32
    %157 = vector.broadcast %cst_55 : f32 to vector<16x1xf32>
    %158 = arith.divf %156, %157 : vector<16x1xf32>
    %159 = vector.broadcast %151 : vector<16x1xf32> to vector<16x32xf32>
    %160 = arith.subf %147, %159 : vector<16x32xf32>
    %cst_56 = arith.constant 9.99999974E-6 : f32
    %161 = vector.broadcast %cst_56 : f32 to vector<16x1xf32>
    %162 = arith.addf %158, %161 : vector<16x1xf32>
    %163 = math.rsqrt %162 : vector<16x1xf32>
    %164 = vector.broadcast %163 : vector<16x1xf32> to vector<16x32xf32>
    %165 = arith.mulf %160, %164 : vector<16x32xf32>
    %166 = vector.broadcast %14 : vector<1x32xf32> to vector<16x32xf32>
    %167 = arith.mulf %165, %166 : vector<16x32xf32>
    %168 = vector.broadcast %15 : vector<1x32xf32> to vector<16x32xf32>
    %169 = arith.addf %167, %168 : vector<16x32xf32>
    %170 = arith.truncf %169 : vector<16x32xf32> to vector<16x32xbf16>
    %c1 = arith.constant 1 : index
    %c0_57 = arith.constant 0 : index
    %c0_58 = arith.constant 0 : index
    %171 = vector.load %arg2[%c1, %c0_57, %c0_58] : memref<2x32x96xbf16, #tpu.memory_space<vmem>>, vector<1x32x96xbf16>
    %172 = vector.shape_cast %171 : vector<1x32x96xbf16> to vector<32x96xbf16>
    %cst_59 = arith.constant dense<0.000000e+00> : vector<16x96xf32>
    %173 = tpu.matmul %170, %172, %cst_59 {dimension_numbers = #tpu.dot_dimension_numbers<[1], [0], [0], [1], [0, 0, 1, 1], [], []>} : vector<16x32xbf16>, vector<32x96xbf16>, vector<16x96xf32> -> vector<16x96xf32>
    %c1_60 = arith.constant 1 : index
    %c0_61 = arith.constant 0 : index
    %c0_62 = arith.constant 0 : index
    %174 = vector.load %arg3[%c1_60, %c0_61, %c0_62] : memref<2x1x96xf32, #tpu.memory_space<vmem>>, vector<1x1x96xf32>
    %175 = vector.shape_cast %174 : vector<1x1x96xf32> to vector<1x96xf32>
    %176 = vector.broadcast %175 : vector<1x96xf32> to vector<16x96xf32>
    %177 = arith.addf %173, %176 : vector<16x96xf32>
    %178 = vector.extract_strided_slice %177 {offsets = [0, 0], sizes = [16, 8], strides = [1, 1]} : vector<16x96xf32> to vector<16x8xf32>
    %179 = vector.shape_cast %178 : vector<16x8xf32> to vector<2x8x8xf32>
    %180 = vector.extract_strided_slice %177 {offsets = [0, 8], sizes = [16, 8], strides = [1, 1]} : vector<16x96xf32> to vector<16x8xf32>
    %181 = vector.shape_cast %180 : vector<16x8xf32> to vector<2x8x8xf32>
    %182 = vector.extract_strided_slice %177 {offsets = [0, 16], sizes = [16, 8], strides = [1, 1]} : vector<16x96xf32> to vector<16x8xf32>
    %183 = vector.shape_cast %182 : vector<16x8xf32> to vector<2x8x8xf32>
    %184 = vector.extract_strided_slice %177 {offsets = [0, 24], sizes = [16, 8], strides = [1, 1]} : vector<16x96xf32> to vector<16x8xf32>
    %185 = vector.shape_cast %184 : vector<16x8xf32> to vector<2x8x8xf32>
    %186 = tpu.concatenate %179, %181, %183, %185 in 0 : vector<2x8x8xf32>, vector<2x8x8xf32>, vector<2x8x8xf32>, vector<2x8x8xf32> -> vector<8x8x8xf32>
    %187 = vector.extract_strided_slice %177 {offsets = [0, 32], sizes = [16, 8], strides = [1, 1]} : vector<16x96xf32> to vector<16x8xf32>
    %188 = vector.shape_cast %187 : vector<16x8xf32> to vector<2x8x8xf32>
    %189 = vector.extract_strided_slice %177 {offsets = [0, 40], sizes = [16, 8], strides = [1, 1]} : vector<16x96xf32> to vector<16x8xf32>
    %190 = vector.shape_cast %189 : vector<16x8xf32> to vector<2x8x8xf32>
    %191 = vector.extract_strided_slice %177 {offsets = [0, 48], sizes = [16, 8], strides = [1, 1]} : vector<16x96xf32> to vector<16x8xf32>
    %192 = vector.shape_cast %191 : vector<16x8xf32> to vector<2x8x8xf32>
    %193 = vector.extract_strided_slice %177 {offsets = [0, 56], sizes = [16, 8], strides = [1, 1]} : vector<16x96xf32> to vector<16x8xf32>
    %194 = vector.shape_cast %193 : vector<16x8xf32> to vector<2x8x8xf32>
    %195 = tpu.concatenate %188, %190, %192, %194 in 0 : vector<2x8x8xf32>, vector<2x8x8xf32>, vector<2x8x8xf32>, vector<2x8x8xf32> -> vector<8x8x8xf32>
    %196 = vector.extract_strided_slice %177 {offsets = [0, 64], sizes = [16, 8], strides = [1, 1]} : vector<16x96xf32> to vector<16x8xf32>
    %197 = vector.shape_cast %196 : vector<16x8xf32> to vector<2x8x8xf32>
    %198 = vector.extract_strided_slice %177 {offsets = [0, 72], sizes = [16, 8], strides = [1, 1]} : vector<16x96xf32> to vector<16x8xf32>
    %199 = vector.shape_cast %198 : vector<16x8xf32> to vector<2x8x8xf32>
    %200 = vector.extract_strided_slice %177 {offsets = [0, 80], sizes = [16, 8], strides = [1, 1]} : vector<16x96xf32> to vector<16x8xf32>
    %201 = vector.shape_cast %200 : vector<16x8xf32> to vector<2x8x8xf32>
    %202 = vector.extract_strided_slice %177 {offsets = [0, 88], sizes = [16, 8], strides = [1, 1]} : vector<16x96xf32> to vector<16x8xf32>
    %203 = vector.shape_cast %202 : vector<16x8xf32> to vector<2x8x8xf32>
    %204 = tpu.concatenate %197, %199, %201, %203 in 0 : vector<2x8x8xf32>, vector<2x8x8xf32>, vector<2x8x8xf32>, vector<2x8x8xf32> -> vector<8x8x8xf32>
    %c1_63 = arith.constant 1 : index
    %205 = memref.load %arg6[%c1_63] : memref<2xf32, #tpu.memory_space<smem>>
    %206 = arith.truncf %186 : vector<8x8x8xf32> to vector<8x8x8xbf16>
    %207 = arith.truncf %195 : vector<8x8x8xf32> to vector<8x8x8xbf16>
    "tpu.trace_start"() <{level = 10 : i32, message = "bqd,bkd->bqk"}> : () -> ()
    %cst_64 = arith.constant dense<0.000000e+00> : vector<8x8x8xf32>
    %208 = tpu.matmul %206, %207, %cst_64 {dimension_numbers = #tpu.dot_dimension_numbers<[2], [2], [1], [1], [0, 0, 0, 1, 1, 1], [0], [0]>} : vector<8x8x8xbf16>, vector<8x8x8xbf16>, vector<8x8x8xf32> -> vector<8x8x8xf32>
    "tpu.trace_stop"() : () -> ()
    %209 = vector.broadcast %205 : f32 to vector<8x8x8xf32>
    %210 = arith.mulf %209, %11 : vector<8x8x8xf32>
    %211 = arith.addf %208, %210 : vector<8x8x8xf32>
    %cst_65 = arith.constant dense<0xFF800000> : vector<8x8xf32>
    %212 = vector.multi_reduction <maximumf>, %211, %cst_65 [2] : vector<8x8x8xf32> to vector<8x8xf32>
    %213 = vector.shape_cast %212 : vector<8x8xf32> to vector<8x8x1xf32>
    %214 = vector.broadcast %213 : vector<8x8x1xf32> to vector<8x8x8xf32>
    %215 = arith.subf %211, %214 : vector<8x8x8xf32>
    %216 = math.exp %215 : vector<8x8x8xf32>
    %cst_66 = arith.constant dense<0.000000e+00> : vector<8x8xf32>
    %217 = vector.multi_reduction <add>, %216, %cst_66 [2] : vector<8x8x8xf32> to vector<8x8xf32>
    %218 = vector.shape_cast %217 : vector<8x8xf32> to vector<8x8x1xf32>
    %219 = tpu.reciprocal %218 {approx = true} : vector<8x8x1xf32> -> vector<8x8x1xf32>
    %220 = vector.broadcast %219 : vector<8x8x1xf32> to vector<8x8x8xf32>
    %221 = arith.mulf %216, %220 : vector<8x8x8xf32>
    %222 = arith.truncf %221 : vector<8x8x8xf32> to vector<8x8x8xbf16>
    %223 = arith.truncf %204 : vector<8x8x8xf32> to vector<8x8x8xbf16>
    "tpu.trace_start"() <{level = 10 : i32, message = "bqk,bkd->bqd"}> : () -> ()
    %cst_67 = arith.constant dense<0.000000e+00> : vector<8x8x8xf32>
    %224 = tpu.matmul %222, %223, %cst_67 {dimension_numbers = #tpu.dot_dimension_numbers<[2], [1], [1], [2], [0, 0, 0, 1, 1, 2], [0], [0]>} : vector<8x8x8xbf16>, vector<8x8x8xbf16>, vector<8x8x8xf32> -> vector<8x8x8xf32>
    "tpu.trace_stop"() : () -> ()
    %225 = vector.extract_strided_slice %224 {offsets = [0, 0, 0], sizes = [2, 8, 8], strides = [1, 1, 1]} : vector<8x8x8xf32> to vector<2x8x8xf32>
    %226 = vector.extract_strided_slice %224 {offsets = [2, 0, 0], sizes = [2, 8, 8], strides = [1, 1, 1]} : vector<8x8x8xf32> to vector<2x8x8xf32>
    %227 = vector.extract_strided_slice %224 {offsets = [4, 0, 0], sizes = [2, 8, 8], strides = [1, 1, 1]} : vector<8x8x8xf32> to vector<2x8x8xf32>
    %228 = vector.extract_strided_slice %224 {offsets = [6, 0, 0], sizes = [2, 8, 8], strides = [1, 1, 1]} : vector<8x8x8xf32> to vector<2x8x8xf32>
    %229 = tpu.concatenate %225, %226, %227, %228 in 2 : vector<2x8x8xf32>, vector<2x8x8xf32>, vector<2x8x8xf32>, vector<2x8x8xf32> -> vector<2x8x32xf32>
    %230 = vector.shape_cast %229 : vector<2x8x32xf32> to vector<16x32xf32>
    %231 = arith.truncf %230 : vector<16x32xf32> to vector<16x32xbf16>
    %c1_68 = arith.constant 1 : index
    %c0_69 = arith.constant 0 : index
    %c0_70 = arith.constant 0 : index
    %232 = vector.load %arg4[%c1_68, %c0_69, %c0_70] : memref<2x32x32xbf16, #tpu.memory_space<vmem>>, vector<1x32x32xbf16>
    %233 = vector.shape_cast %232 : vector<1x32x32xbf16> to vector<32x32xbf16>
    %cst_71 = arith.constant dense<0.000000e+00> : vector<16x32xf32>
    %234 = tpu.matmul %231, %233, %cst_71 {dimension_numbers = #tpu.dot_dimension_numbers<[1], [0], [0], [1], [0, 0, 1, 1], [], []>} : vector<16x32xbf16>, vector<32x32xbf16>, vector<16x32xf32> -> vector<16x32xf32>
    %c1_72 = arith.constant 1 : index
    %c0_73 = arith.constant 0 : index
    %c0_74 = arith.constant 0 : index
    %235 = vector.load %arg5[%c1_72, %c0_73, %c0_74] : memref<2x1x32xf32, #tpu.memory_space<vmem>>, vector<1x1x32xf32>
    %236 = vector.shape_cast %235 : vector<1x1x32xf32> to vector<1x32xf32>
    %237 = vector.broadcast %236 : vector<1x32xf32> to vector<16x32xf32>
    %238 = arith.addf %234, %237 : vector<16x32xf32>
    %239 = vector.extract_strided_slice %221 {offsets = [0, 0, 0], sizes = [8, 1, 8], strides = [1, 1, 1]} : vector<8x8x8xf32> to vector<8x1x8xf32>
    %240 = vector.shape_cast %239 : vector<8x1x8xf32> to vector<8x8xf32>
    %241 = vector.extract_strided_slice %221 {offsets = [0, 1, 0], sizes = [8, 1, 8], strides = [1, 1, 1]} : vector<8x8x8xf32> to vector<8x1x8xf32>
    %242 = vector.shape_cast %241 : vector<8x1x8xf32> to vector<8x8xf32>
    %243 = vector.extract_strided_slice %221 {offsets = [0, 2, 0], sizes = [8, 1, 8], strides = [1, 1, 1]} : vector<8x8x8xf32> to vector<8x1x8xf32>
    %244 = vector.shape_cast %243 : vector<8x1x8xf32> to vector<8x8xf32>
    %245 = vector.extract_strided_slice %221 {offsets = [0, 3, 0], sizes = [8, 1, 8], strides = [1, 1, 1]} : vector<8x8x8xf32> to vector<8x1x8xf32>
    %246 = vector.shape_cast %245 : vector<8x1x8xf32> to vector<8x8xf32>
    %247 = vector.extract_strided_slice %221 {offsets = [0, 4, 0], sizes = [8, 1, 8], strides = [1, 1, 1]} : vector<8x8x8xf32> to vector<8x1x8xf32>
    %248 = vector.shape_cast %247 : vector<8x1x8xf32> to vector<8x8xf32>
    %249 = vector.extract_strided_slice %221 {offsets = [0, 5, 0], sizes = [8, 1, 8], strides = [1, 1, 1]} : vector<8x8x8xf32> to vector<8x1x8xf32>
    %250 = vector.shape_cast %249 : vector<8x1x8xf32> to vector<8x8xf32>
    %251 = vector.extract_strided_slice %221 {offsets = [0, 6, 0], sizes = [8, 1, 8], strides = [1, 1, 1]} : vector<8x8x8xf32> to vector<8x1x8xf32>
    %252 = vector.shape_cast %251 : vector<8x1x8xf32> to vector<8x8xf32>
    %253 = vector.extract_strided_slice %221 {offsets = [0, 7, 0], sizes = [8, 1, 8], strides = [1, 1, 1]} : vector<8x8x8xf32> to vector<8x1x8xf32>
    %254 = vector.shape_cast %253 : vector<8x1x8xf32> to vector<8x8xf32>
    %255 = tpu.concatenate %240, %242, %244, %246, %248, %250, %252, %254 in 1 : vector<8x8xf32>, vector<8x8xf32>, vector<8x8xf32>, vector<8x8xf32>, vector<8x8xf32>, vector<8x8xf32>, vector<8x8xf32>, vector<8x8xf32> -> vector<8x64xf32>
    %256 = vector.extract_strided_slice %255 {offsets = [0, 0], sizes = [2, 64], strides = [1, 1]} : vector<8x64xf32> to vector<2x64xf32>
    %257 = vector.extract_strided_slice %255 {offsets = [2, 0], sizes = [2, 64], strides = [1, 1]} : vector<8x64xf32> to vector<2x64xf32>
    %258 = vector.extract_strided_slice %255 {offsets = [4, 0], sizes = [2, 64], strides = [1, 1]} : vector<8x64xf32> to vector<2x64xf32>
    %259 = vector.extract_strided_slice %255 {offsets = [6, 0], sizes = [2, 64], strides = [1, 1]} : vector<8x64xf32> to vector<2x64xf32>
    %260 = tpu.concatenate %256, %257, %258, %259 in 1 : vector<2x64xf32>, vector<2x64xf32>, vector<2x64xf32>, vector<2x64xf32> -> vector<2x256xf32>
    %c1_75 = arith.constant 1 : index
    %c0_76 = arith.constant 0 : index
    %c0_77 = arith.constant 0 : index
    %261 = vector.load %arg19[%c1_75, %c0_76, %c0_77] : memref<2x2x256xf32, #tpu.memory_space<vmem>>, vector<1x2x256xf32>
    %262 = vector.shape_cast %261 : vector<1x2x256xf32> to vector<2x256xf32>
    %263 = vector.shape_cast %260 : vector<2x256xf32> to vector<1x2x256xf32>
    tpu.vector_store %arg19[%c1_75, %c0_76, %c0_77], %263 {strides = array<i32>} : memref<2x2x256xf32, #tpu.memory_space<vmem>>, vector<1x2x256xf32>,
    %264 = arith.addf %169, %238 : vector<16x32xf32>
    %cst_78 = arith.constant dense<0.000000e+00> : vector<16xf32>
    %265 = vector.multi_reduction <add>, %264, %cst_78 [1] : vector<16x32xf32> to vector<16xf32>
    %266 = vector.shape_cast %265 : vector<16xf32> to vector<16x1xf32>
    %cst_79 = arith.constant 3.200000e+01 : f32
    %267 = vector.broadcast %cst_79 : f32 to vector<16x1xf32>
    %268 = arith.divf %266, %267 : vector<16x1xf32>
    %269 = vector.broadcast %268 : vector<16x1xf32> to vector<16x32xf32>
    %270 = arith.subf %264, %269 : vector<16x32xf32>
    %271 = arith.mulf %270, %270 : vector<16x32xf32>
    %cst_80 = arith.constant dense<0.000000e+00> : vector<16xf32>
    %272 = vector.multi_reduction <add>, %271, %cst_80 [1] : vector<16x32xf32> to vector<16xf32>
    %273 = vector.shape_cast %272 : vector<16xf32> to vector<16x1xf32>
    %cst_81 = arith.constant 3.200000e+01 : f32
    %274 = vector.broadcast %cst_81 : f32 to vector<16x1xf32>
    %275 = arith.divf %273, %274 : vector<16x1xf32>
    %276 = vector.broadcast %268 : vector<16x1xf32> to vector<16x32xf32>
    %277 = arith.subf %264, %276 : vector<16x32xf32>
    %cst_82 = arith.constant 9.99999974E-6 : f32
    %278 = vector.broadcast %cst_82 : f32 to vector<16x1xf32>
    %279 = arith.addf %275, %278 : vector<16x1xf32>
    %280 = math.rsqrt %279 : vector<16x1xf32>
    %281 = vector.broadcast %280 : vector<16x1xf32> to vector<16x32xf32>
    %282 = arith.mulf %277, %281 : vector<16x32xf32>
    %283 = vector.broadcast %12 : vector<1x32xf32> to vector<16x32xf32>
    %284 = arith.mulf %282, %283 : vector<16x32xf32>
    %285 = vector.broadcast %13 : vector<1x32xf32> to vector<16x32xf32>
    %286 = arith.addf %284, %285 : vector<16x32xf32>
    %287 = arith.truncf %286 : vector<16x32xf32> to vector<16x32xbf16>
    %cst_83 = arith.constant dense<0.000000e+00> : vector<16x64xf32>
    %288 = tpu.matmul %287, %16, %cst_83 {dimension_numbers = #tpu.dot_dimension_numbers<[1], [0], [0], [1], [0, 0, 1, 1], [], []>} : vector<16x32xbf16>, vector<32x64xbf16>, vector<16x64xf32> -> vector<16x64xf32>
    %289 = vector.broadcast %17 : vector<1x64xf32> to vector<16x64xf32>
    %290 = arith.addf %288, %289 : vector<16x64xf32>
    %cst_84 = arith.constant 0.000000e+00 : f32
    %291 = vector.broadcast %cst_84 : f32 to vector<16x64xf32>
    %292 = arith.maximumf %290, %291 : vector<16x64xf32>
    %293 = arith.truncf %292 : vector<16x64xf32> to vector<16x64xbf16>
    %cst_85 = arith.constant dense<0.000000e+00> : vector<16x32xf32>
    %294 = tpu.matmul %293, %18, %cst_85 {dimension_numbers = #tpu.dot_dimension_numbers<[1], [0], [0], [1], [0, 0, 1, 1], [], []>} : vector<16x64xbf16>, vector<64x32xbf16>, vector<16x32xf32> -> vector<16x32xf32>
    %295 = vector.broadcast %19 : vector<1x32xf32> to vector<16x32xf32>
    %296 = arith.addf %294, %295 : vector<16x32xf32>
    %297 = arith.addf %286, %296 : vector<16x32xf32>
    %cst_86 = arith.constant dense<0.000000e+00> : vector<16xf32>
    %298 = vector.multi_reduction <add>, %297, %cst_86 [1] : vector<16x32xf32> to vector<16xf32>
    %299 = vector.shape_cast %298 : vector<16xf32> to vector<16x1xf32>
    %cst_87 = arith.constant 3.200000e+01 : f32
    %300 = vector.broadcast %cst_87 : f32 to vector<16x1xf32>
    %301 = arith.divf %299, %300 : vector<16x1xf32>
    %302 = vector.broadcast %301 : vector<16x1xf32> to vector<16x32xf32>
    %303 = arith.subf %297, %302 : vector<16x32xf32>
    %304 = arith.mulf %303, %303 : vector<16x32xf32>
    %cst_88 = arith.constant dense<0.000000e+00> : vector<16xf32>
    %305 = vector.multi_reduction <add>, %304, %cst_88 [1] : vector<16x32xf32> to vector<16xf32>
    %306 = vector.shape_cast %305 : vector<16xf32> to vector<16x1xf32>
    %cst_89 = arith.constant 3.200000e+01 : f32
    %307 = vector.broadcast %cst_89 : f32 to vector<16x1xf32>
    %308 = arith.divf %306, %307 : vector<16x1xf32>
    %309 = vector.broadcast %301 : vector<16x1xf32> to vector<16x32xf32>
    %310 = arith.subf %297, %309 : vector<16x32xf32>
    %cst_90 = arith.constant 9.99999974E-6 : f32
    %311 = vector.broadcast %cst_90 : f32 to vector<16x1xf32>
    %312 = arith.addf %308, %311 : vector<16x1xf32>
    %313 = math.rsqrt %312 : vector<16x1xf32>
    %314 = vector.broadcast %313 : vector<16x1xf32> to vector<16x32xf32>
    %315 = arith.mulf %310, %314 : vector<16x32xf32>
    %316 = vector.broadcast %14 : vector<1x32xf32> to vector<16x32xf32>
    %317 = arith.mulf %315, %316 : vector<16x32xf32>
    %318 = vector.broadcast %15 : vector<1x32xf32> to vector<16x32xf32>
    %319 = arith.addf %317, %318 : vector<16x32xf32>
    %320 = vector.shape_cast %319 : vector<16x32xf32> to vector<2x8x32xf32>
    %cst_91 = arith.constant dense<0.000000e+00> : vector<2x32xf32>
    %321 = vector.multi_reduction <add>, %320, %cst_91 [1] : vector<2x8x32xf32> to vector<2x32xf32>
    %cst_92 = arith.constant 8.000000e+00 : f32
    %322 = vector.broadcast %cst_92 : f32 to vector<2x32xf32>
    %323 = arith.divf %321, %322 : vector<2x32xf32>
    %c0_93 = arith.constant 0 : index
    %c0_94 = arith.constant 0 : index
    %324 = vector.load %arg18[%c0_93, %c0_94] : memref<2x32xf32, #tpu.memory_space<vmem>>, vector<2x32xf32>
    tpu.vector_store %arg18[%c0_93, %c0_94], %323 {strides = array<i32>} : memref<2x32xf32, #tpu.memory_space<vmem>>, vector<2x32xf32>,
    %325 = arith.truncf %323 : vector<2x32xf32> to vector<2x32xbf16>
    %c0_95 = arith.constant 0 : index
    %c0_96 = arith.constant 0 : index
    %326 = vector.load %arg15[%c0_95, %c0_96] : memref<32x8xbf16, #tpu.memory_space<vmem>>, vector<32x8xbf16>
    %cst_97 = arith.constant dense<0.000000e+00> : vector<2x8xf32>
    %327 = tpu.matmul %325, %326, %cst_97 {dimension_numbers = #tpu.dot_dimension_numbers<[1], [0], [0], [1], [0, 0, 1, 1], [], []>} : vector<2x32xbf16>, vector<32x8xbf16>, vector<2x8xf32> -> vector<2x8xf32>
    %c0_98 = arith.constant 0 : index
    %c0_99 = arith.constant 0 : index
    %328 = vector.load %arg16[%c0_98, %c0_99] : memref<1x8xf32, #tpu.memory_space<vmem>>, vector<1x8xf32>
    %329 = vector.broadcast %328 : vector<1x8xf32> to vector<2x8xf32>
    %330 = arith.addf %327, %329 : vector<2x8xf32>
    %c0_100 = arith.constant 0 : index
    %c0_101 = arith.constant 0 : index
    %331 = vector.load %arg17[%c0_100, %c0_101] : memref<2x8xf32, #tpu.memory_space<vmem>>, vector<2x8xf32>
    tpu.vector_store %arg17[%c0_100, %c0_101], %330 {strides = array<i32>} : memref<2x8xf32, #tpu.memory_space<vmem>>, vector<2x8xf32>,
    return
  }
}

</mosaic_0001>

<llo_original>
// kernel: tpu_custom_call.1
$region0: #{tpu_custom_call.1}
  #allocation0 [shape = 'u32[]', space=smem, size = 0x4, offset = 0x4, fixed_abs, tag = 'smem constant byte address 0x4 - core index']
  #allocation1 [shape = 'u32[72,128]{1,0:T(1,128)}', space=vmem, size = 0x9000, scoped, tag = 'internal scratch']
  %s0 = inlined_call_operand.hbm [shape: f32[16,32], index: 0, kind: input, shape index: {}]
  %s1 = inlined_call_operand.hbm [shape: f32[2,8,16], index: 1, kind: input, shape index: {}]
  %s2 = inlined_call_operand.vmem [shape: bf16[2,32,96], index: 2, kind: input, shape index: {}]
  %s3 = inlined_call_operand.vmem [shape: f32[2,1,96], index: 3, kind: input, shape index: {}]
  %s4 = inlined_call_operand.vmem [shape: bf16[2,32,32], index: 4, kind: input, shape index: {}]
  %s5 = inlined_call_operand.vmem [shape: f32[2,1,32], index: 5, kind: input, shape index: {}]
  %s6 = inlined_call_operand.vmem [shape: f32[2], index: 6, kind: input, shape index: {}]
  %s7 = inlined_call_operand.vmem [shape: f32[1,32], index: 7, kind: input, shape index: {}]
  %s8 = inlined_call_operand.vmem [shape: f32[1,32], index: 8, kind: input, shape index: {}]
  %s9 = inlined_call_operand.hbm [shape: bf16[32,64], index: 9, kind: input, shape index: {}]
  %s10 = inlined_call_operand.vmem [shape: f32[1,64], index: 10, kind: input, shape index: {}]
  %s11 = inlined_call_operand.vmem [shape: bf16[64,32], index: 11, kind: input, shape index: {}]
  %s12 = inlined_call_operand.vmem [shape: f32[1,32], index: 12, kind: input, shape index: {}]
  %s13 = inlined_call_operand.vmem [shape: f32[1,32], index: 13, kind: input, shape index: {}]
  %s14 = inlined_call_operand.vmem [shape: f32[1,32], index: 14, kind: input, shape index: {}]
  %s15 = inlined_call_operand.vmem [shape: bf16[32,8], index: 15, kind: input, shape index: {}]
  %s16 = inlined_call_operand.vmem [shape: f32[1,8], index: 16, kind: input, shape index: {}]
  %s17 = inlined_call_operand.hbm [shape: f32[2,8], index: 17, kind: output, shape index: {0}]
  %s18 = inlined_call_operand.hbm [shape: f32[2,32], index: 18, kind: output, shape index: {1}]
  %s19 = inlined_call_operand.hbm [shape: f32[2,2,256], index: 19, kind: output, shape index: {2}]
  %20 = xla_tuple %s17, %s18, %s19
  %s21 = sld [smem:[#allocation0]]
  $region110: #{tpu_custom_call.1} parent=0
    _
  %s23 = ssub.s32 1, %s21
  %s24 = scalar_select 0, %s23, %s21
  $region1: #{tpu_custom_call.1} parent=0
    #allocation2 [shape = 'u8[8192]{0}', space=vmem, size = 0x2000, scoped, tag = 'input window, operand 0, single buffered']
    #allocation3 [shape = 's32[1]{0}', space=sflag, size = 0x4, scoped, tag = 'scoped memory for tpu_custom_call.1']
    #allocation4 [shape = 's32[1]{0}', space=sflag, size = 0x4, scoped, tag = 'scoped memory for tpu_custom_call.1']
    #allocation5 [shape = 's32[1]{0}', space=sflag, size = 0x4, scoped, tag = 'scoped memory for tpu_custom_call.1']
    #allocation6 [shape = 'u8[8192]{0}', space=vmem, size = 0x2000, scoped, tag = 'input window, operand 1, single buffered']
    #allocation7 [shape = 's32[1]{0}', space=sflag, size = 0x4, scoped, tag = 'scoped memory for tpu_custom_call.1']
    #allocation8 [shape = 'u8[512]{0}', space=smem, size = 0x200, scoped, tag = 'input window, operand 6, single buffered']
    #allocation9 [shape = 'u8[8192]{0}', space=vmem, size = 0x2000, scoped, tag = 'input window, operand 9, single buffered']
    #allocation10 [shape = 'u8[1024]{0}', space=vmem, size = 0x400, scoped, tag = 'output window, operand 0, single buffered']
    #allocation11 [shape = 'u8[1024]{0}', space=vmem, size = 0x400, scoped, tag = 'output window, operand 1, single buffered']
    #allocation12 [shape = 's32[1]{0}', space=sflag, size = 0x4, scoped, tag = 'scoped memory for tpu_custom_call.1']
    #allocation13 [shape = 'u8[4096]{0}', space=vmem, size = 0x1000, scoped, tag = 'output window, operand 2, single buffered']
    %25 = vsyncpa [#allocation3], 0
    %26 = vsyncpa [#allocation7], 0
    %27 = vsyncpa [#allocation5], 0
    %28 = vsyncpa [#allocation4], 0
    %29 = vsyncpa [#allocation12], 0
    // Predicated region
    $region2: #{tpu_custom_call.1} parent=1 // pred_check
      _
    $region3: #{tpu_custom_call.1} parent=1 // pred_check_branch
      %31 = sbr.rel (0) target = $region5
    $region4: #{tpu_custom_call.1} parent=1 // pred_region
      %33 = vsyncadd [#allocation3], 0
      %s34 = sshll.u32 %s0, 4
      %s35 = int_to_ptr.hbm [resolvable:$true] %s34
      %s36 = sshll.u32 [#allocation2], 4
      %s37 = int_to_ptr.vmem [resolvable:$true] %s36
      %42 = dma.hbm_to_vmem [thread:$0]  %s35, 256, %s37, [#allocation3], 128, 128, 8
    $region5: #{tpu_custom_call.1} parent=1 // pred_fallthru
      _
    // Predicated region
    $region6: #{tpu_custom_call.1} parent=1 // pred_check
      _
    $region7: #{tpu_custom_call.1} parent=1 // pred_check_branch
      %44 = sbr.rel (0) target = $region9
    $region8: #{tpu_custom_call.1} parent=1 // pred_region
      %46 = vsyncadd [#allocation7], 0
      %s47 = sshll.u32 %s1, 4
      %s48 = int_to_ptr.hbm [resolvable:$true] %s47
      %s49 = sshll.u32 [#allocation6], 4
      %s50 = int_to_ptr.vmem [resolvable:$true] %s49
      %55 = dma.hbm_to_vmem [thread:$0]  %s48, 256, %s50, [#allocation7], 128, 128, 8
    $region9: #{tpu_custom_call.1} parent=1 // pred_fallthru
      _
    // Predicated region
    $region10: #{tpu_custom_call.1} parent=1 // pred_check
      _
    $region11: #{tpu_custom_call.1} parent=1 // pred_check_branch
      %57 = sbr.rel (0) target = $region13
    $region12: #{tpu_custom_call.1} parent=1 // pred_region
      _
    $region13: #{tpu_custom_call.1} parent=1 // pred_fallthru
      _
    // Predicated region
    $region14: #{tpu_custom_call.1} parent=1 // pred_check
      _
    $region15: #{tpu_custom_call.1} parent=1 // pred_check_branch
      %59 = sbr.rel (0) target = $region17
    $region16: #{tpu_custom_call.1} parent=1 // pred_region
      _
    $region17: #{tpu_custom_call.1} parent=1 // pred_fallthru
      _
    // Predicated region
    $region18: #{tpu_custom_call.1} parent=1 // pred_check
      _
    $region19: #{tpu_custom_call.1} parent=1 // pred_check_branch
      %61 = sbr.rel (0) target = $region21
    $region20: #{tpu_custom_call.1} parent=1 // pred_region
      _
    $region21: #{tpu_custom_call.1} parent=1 // pred_fallthru
      _
    // Predicated region
    $region22: #{tpu_custom_call.1} parent=1 // pred_check
      _
    $region23: #{tpu_custom_call.1} parent=1 // pred_check_branch
      %63 = sbr.rel (0) target = $region25
    $region24: #{tpu_custom_call.1} parent=1 // pred_region
      _
    $region25: #{tpu_custom_call.1} parent=1 // pred_fallthru
      _
    // Predicated region
    $region26: #{tpu_custom_call.1} parent=1 // pred_check
      _
    $region27: #{tpu_custom_call.1} parent=1 // pred_check_branch
      %65 = sbr.rel (0) target = $region29
    $region28: #{tpu_custom_call.1} parent=1 // pred_region
      %67 = vsyncadd [#allocation5], 0
      %s69 = sshll.u32 %s6, 4
      %s70 = int_to_ptr.vmem [resolvable:$true] %s69
      %72 = dma.vmem_to_smem %s70, 16, [#allocation8], [#allocation5]
    $region29: #{tpu_custom_call.1} parent=1 // pred_fallthru
      _
    // Predicated region
    $region30: #{tpu_custom_call.1} parent=1 // pred_check
      _
    $region31: #{tpu_custom_call.1} parent=1 // pred_check_branch
      %74 = sbr.rel (0) target = $region33
    $region32: #{tpu_custom_call.1} parent=1 // pred_region
      _
    $region33: #{tpu_custom_call.1} parent=1 // pred_fallthru
      _
    // Predicated region
    $region34: #{tpu_custom_call.1} parent=1 // pred_check
      _
    $region35: #{tpu_custom_call.1} parent=1 // pred_check_branch
      %76 = sbr.rel (0) target = $region37
    $region36: #{tpu_custom_call.1} parent=1 // pred_region
      _
    $region37: #{tpu_custom_call.1} parent=1 // pred_fallthru
      _
    // Predicated region
    $region38: #{tpu_custom_call.1} parent=1 // pred_check
      _
    $region39: #{tpu_custom_call.1} parent=1 // pred_check_branch
      %78 = sbr.rel (0) target = $region41
    $region40: #{tpu_custom_call.1} parent=1 // pred_region
      %80 = vsyncadd [#allocation7], 0
      %s81 = sshll.u32 %s9, 4
      %s82 = int_to_ptr.hbm [resolvable:$true] %s81
      %s83 = sshll.u32 [#allocation9], 4
      %s84 = int_to_ptr.vmem [resolvable:$true] %s83
      %89 = dma.hbm_to_vmem [thread:$0]  %s82, 256, %s84, [#allocation7], 64, 64, 4
    $region41: #{tpu_custom_call.1} parent=1 // pred_fallthru
      _
    // Predicated region
    $region42: #{tpu_custom_call.1} parent=1 // pred_check
      _
    $region43: #{tpu_custom_call.1} parent=1 // pred_check_branch
      %91 = sbr.rel (0) target = $region45
    $region44: #{tpu_custom_call.1} parent=1 // pred_region
      _
    $region45: #{tpu_custom_call.1} parent=1 // pred_fallthru
      _
    // Predicated region
    $region46: #{tpu_custom_call.1} parent=1 // pred_check
      _
    $region47: #{tpu_custom_call.1} parent=1 // pred_check_branch
      %93 = sbr.rel (0) target = $region49
    $region48: #{tpu_custom_call.1} parent=1 // pred_region
      _
    $region49: #{tpu_custom_call.1} parent=1 // pred_fallthru
      _
    // Predicated region
    $region50: #{tpu_custom_call.1} parent=1 // pred_check
      _
    $region51: #{tpu_custom_call.1} parent=1 // pred_check_branch
      %95 = sbr.rel (0) target = $region53
    $region52: #{tpu_custom_call.1} parent=1 // pred_region
      _
    $region53: #{tpu_custom_call.1} parent=1 // pred_fallthru
      _
    // Predicated region
    $region54: #{tpu_custom_call.1} parent=1 // pred_check
      _
    $region55: #{tpu_custom_call.1} parent=1 // pred_check_branch
      %97 = sbr.rel (0) target = $region57
    $region56: #{tpu_custom_call.1} parent=1 // pred_region
      _
    $region57: #{tpu_custom_call.1} parent=1 // pred_fallthru
      _
    // Predicated region
    $region58: #{tpu_custom_call.1} parent=1 // pred_check
      _
    $region59: #{tpu_custom_call.1} parent=1 // pred_check_branch
      %99 = sbr.rel (0) target = $region61
    $region60: #{tpu_custom_call.1} parent=1 // pred_region
      _
    $region61: #{tpu_custom_call.1} parent=1 // pred_fallthru
      _
    // Predicated region
    $region62: #{tpu_custom_call.1} parent=1 // pred_check
      _
    $region63: #{tpu_custom_call.1} parent=1 // pred_check_branch
      %101 = sbr.rel (0) target = $region65
    $region64: #{tpu_custom_call.1} parent=1 // pred_region
      _
    $region65: #{tpu_custom_call.1} parent=1 // pred_fallthru
      _
    // Predicated region
    $region66: #{tpu_custom_call.1} parent=1 // pred_check
      _
    $region67: #{tpu_custom_call.1} parent=1 // pred_check_branch
      %103 = sbr.rel (0) target = $region69
    $region68: #{tpu_custom_call.1} parent=1 // pred_region
      _
    $region69: #{tpu_custom_call.1} parent=1 // pred_fallthru
      _
    // Predicated region
    $region70: #{tpu_custom_call.1} parent=1 // pred_check
      _
    $region71: #{tpu_custom_call.1} parent=1 // pred_check_branch
      %105 = sbr.rel (0) target = $region73
    $region72: #{tpu_custom_call.1} parent=1 // pred_region
      %107 = dma.done [#allocation3], 256
    $region73: #{tpu_custom_call.1} parent=1 // pred_fallthru
      _
    // Predicated region
    $region74: #{tpu_custom_call.1} parent=1 // pred_check
      _
    $region75: #{tpu_custom_call.1} parent=1 // pred_check_branch
      %109 = sbr.rel (0) target = $region77
    $region76: #{tpu_custom_call.1} parent=1 // pred_region
      %111 = dma.done [#allocation7], 256
    $region77: #{tpu_custom_call.1} parent=1 // pred_fallthru
      _
    // Predicated region
    $region78: #{tpu_custom_call.1} parent=1 // pred_check
      _
    $region79: #{tpu_custom_call.1} parent=1 // pred_check_branch
      %113 = sbr.rel (0) target = $region81
    $region80: #{tpu_custom_call.1} parent=1 // pred_region
      %115 = dma.done [#allocation5], 16
    $region81: #{tpu_custom_call.1} parent=1 // pred_fallthru
      _
    // Predicated region
    $region82: #{tpu_custom_call.1} parent=1 // pred_check
      _
    $region83: #{tpu_custom_call.1} parent=1 // pred_check_branch
      %117 = sbr.rel (0) target = $region85
    $region84: #{tpu_custom_call.1} parent=1 // pred_region
      %119 = dma.done [#allocation7], 256
    $region85: #{tpu_custom_call.1} parent=1 // pred_fallthru
      _
    %120 = sfence
    %v122 = vld [vmem:[#allocation2] sm:$0xff]
    %v123 = vld [vmem:[#allocation2 + $0x8] sm:$0xff]
    %v124 = vld [vmem:[#allocation6] sm:$0xff]
    %v125 = vld [vmem:[#allocation6 + $0x8] sm:$0xff]
    %v126 = vmul.f32 %v124, %v124
    %v127 = vmul.f32 %v125, %v125
    %vm128 = vcmask 130048
    %v129 = vsel %vm128, %v126, 0.0
    %130 = vadd.xlane.f32.xlu0 %v129
    %v131 = vpop.xlane.xlu0 %130
    %v132 = vsel %vm128, %v127, 0.0
    %133 = vadd.xlane.f32.xlu0 %v132
    %v134 = vpop.xlane.xlu0 %133
    %v135 = vrsqrt.pop %v131
    %v136 = vmul.f32 %v135, %v131
    %v137 = vmul.f32 %v136, %v135
    %v138 = vmul.f32 0.5, %v137
    %v139 = vsub.f32 1.5, %v138
    %v140 = vmul.f32 %v135, %v139
    %v141 = vmul.f32 %v131, %v140
    %vm142 = vcmp.eq.f32.partialorder %v131, inf
    %v143 = vsel %vm142, %v131, %v141
    %vm144 = vcmp.eq.f32.partialorder %v131, 0.0
    %v145 = vand.u32 %v131, 2147483648
    %v146 = vsel %vm144, %v145, %v143
    %v147 = vrsqrt.pop %v134
    %v148 = vmul.f32 %v147, %v134
    %v149 = vmul.f32 %v148, %v147
    %v150 = vmul.f32 0.5, %v149
    %v151 = vsub.f32 1.5, %v150
    %v152 = vmul.f32 %v147, %v151
    %v153 = vmul.f32 %v134, %v152
    %vm154 = vcmp.eq.f32.partialorder %v134, inf
    %v155 = vsel %vm154, %v134, %v153
    %vm156 = vcmp.eq.f32.partialorder %v134, 0.0
    %v157 = vand.u32 %v134, 2147483648
    %v158 = vsel %vm156, %v157, %v155
    %v159 = vmax.f32 %v146, 1e-12
    %v160 = vmax.f32 %v158, 1e-12
    %v161 = vrcp.pop %v159
    %v162 = vmul.f32 %v159, %v161
    %v163 = vsub.f32 1.0, %v162
    %v164 = vmul.f32 %v161, %v163
    %v165 = vadd.f32 %v161, %v164
    %vm166 = vweird.f32 %v159
    %vm167 = vweird.f32 %v161
    %vm168 = vmor %vm166, %vm167
    %v169 = vsel %vm168, %v161, %v165
    %v170 = vand.u32 2147483647, %v159
    %vm171 = vcmp.eq.f32.partialorder %v170, 8.507059e+37
    %v172 = vand.u32 %v159, 2147483648
    %v173 = vor.u32 1.1754944e-38, %v172
    %v174 = vsel %vm171, %v173, %v169
    %v175 = vmul.f32 %v124, %v174
    %v176 = vrcp.pop %v160
    %v177 = vmul.f32 %v160, %v176
    %v178 = vsub.f32 1.0, %v177
    %v179 = vmul.f32 %v176, %v178
    %v180 = vadd.f32 %v176, %v179
    %vm181 = vweird.f32 %v160
    %vm182 = vweird.f32 %v176
    %vm183 = vmor %vm181, %vm182
    %v184 = vsel %vm183, %v176, %v180
    %v185 = vand.u32 2147483647, %v160
    %vm186 = vcmp.eq.f32.partialorder %v185, 8.507059e+37
    %v187 = vand.u32 %v160, 2147483648
    %v188 = vor.u32 1.1754944e-38, %v187
    %v189 = vsel %vm186, %v188, %v184
    %v190 = vmul.f32 %v125, %v189
    %v192 = vsel %vm128, %v175, 0
    %194 = vmatpush.xpose.msra.mxu0 0.0
    %195 = vmatpush.xpose.msra.mxu0 0.0
    %196 = vmatpush.xpose.msra.mxu0 0.0
    %197 = vmatpush.xpose.msra.mxu0 0.0
    %198 = vmatpush.xpose.msra.mxu0 0.0
    %199 = vmatpush.xpose.msra.mxu0 0.0
    %200 = vmatpush.xpose.msra.mxu0 0.0
    %201 = vmatpush.xpose.msra.mxu0 0.0
    %202 = vmatpush.xpose.msra.mxu0 0.0
    %203 = vmatpush.xpose.msra.mxu0 0.0
    %204 = vmatpush.xpose.msra.mxu0 0.0
    %205 = vmatpush.xpose.msra.mxu0 0.0
    %206 = vmatpush.xpose.msra.mxu0 0.0
    %207 = vmatpush.xpose.msra.mxu0 0.0
    %208 = vmatpush.xpose.msra.mxu0 0.0
    %209 = vmatpush.xpose.msra.mxu0 %v192
    %210 = vmatmul.f32.gmra.mxu0 %v192
    %v211 = vpop.f32.mrf.mxu0
    %v212 = vadd.f32 0.0, %v211
    %213 = vdwg.mxu0
    %v215 = vsel %vm128, %v190, 0
    %217 = vmatpush.xpose.msra.mxu0 0.0
    %218 = vmatpush.xpose.msra.mxu0 0.0
    %219 = vmatpush.xpose.msra.mxu0 0.0
    %220 = vmatpush.xpose.msra.mxu0 0.0
    %221 = vmatpush.xpose.msra.mxu0 0.0
    %222 = vmatpush.xpose.msra.mxu0 0.0
    %223 = vmatpush.xpose.msra.mxu0 0.0
    %224 = vmatpush.xpose.msra.mxu0 0.0
    %225 = vmatpush.xpose.msra.mxu0 0.0
    %226 = vmatpush.xpose.msra.mxu0 0.0
    %227 = vmatpush.xpose.msra.mxu0 0.0
    %228 = vmatpush.xpose.msra.mxu0 0.0
    %229 = vmatpush.xpose.msra.mxu0 0.0
    %230 = vmatpush.xpose.msra.mxu0 0.0
    %231 = vmatpush.xpose.msra.mxu0 0.0
    %232 = vmatpush.xpose.msra.mxu0 %v215
    %233 = vmatmul.f32.gmra.mxu0 %v215
    %v234 = vpop.f32.mrf.mxu0
    %v235 = vadd.f32 0.0, %v234
    %236 = vdwg.mxu0
    %v237 = vld [vmem:[%s7] sm:$0x1]
    %v238 = vld [vmem:[%s8] sm:$0x1]
    %v239 = vld [vmem:[%s13] sm:$0x1]
    %v240 = vld [vmem:[%s14] sm:$0x1]
    %v241 = vld [vmem:[#allocation9] sm:$0xf]
    %v242 = vld [vmem:[#allocation9 + $0x4] sm:$0xf]
    %v243 = vld [vmem:[#allocation9 + $0x8] sm:$0xf]
    %v244 = vld [vmem:[#allocation9 + $0xc] sm:$0xf]
    %v245 = vld [vmem:[%s10] sm:$0x1]
    %v246 = vld [vmem:[%s11] sm:$0xf]
    %v247 = vld [vmem:[%s11 + $0x4] sm:$0xf]
    %v248 = vld [vmem:[%s11 + $0x8] sm:$0xf]
    %v249 = vld [vmem:[%s11 + $0xc] sm:$0xf]
    %v250 = vld [vmem:[%s11 + $0x10] sm:$0xf]
    %v251 = vld [vmem:[%s11 + $0x14] sm:$0xf]
    %v252 = vld [vmem:[%s11 + $0x18] sm:$0xf]
    %v253 = vld [vmem:[%s11 + $0x1c] sm:$0xf]
    %v254 = vld [vmem:[%s12] sm:$0x1]
    %v255 = vpack.c.bf16 %v123, %v122
    %v256 = vld [vmem:[%s2] sm:$0xf]
    %v257 = vld [vmem:[%s2 + $0x4] sm:$0xf]
    %v258 = vld [vmem:[%s2 + $0x8] sm:$0xf]
    %v259 = vld [vmem:[%s2 + $0xc] sm:$0xf]
    %v260 = vld [vmem:[%s3] sm:$0x1]
    %v262 = vperm.slane %v260, 0
    %v268 = vunpack.c.l.b16 %v256
    %v269 = vunpack.c.l.b16 %v257
    %v270 = vunpack.c.l.b16 %v258
    %v271 = vunpack.c.l.b16 %v259
    %v272 = vpack.c.b16 %v269, %v268
    %v273 = vpack.c.b16 %v271, %v270
    %vm276 = vcmask 261120
    %v278 = vsel %vm276, %v255, 0
    %280 = vmatpush.bf16.msra.mxu0 0
    %281 = vmatpush.bf16.msra.mxu0 0
    %282 = vmatpush.bf16.msra.mxu0 0
    %283 = vmatpush.bf16.msra.mxu0 0
    %284 = vmatpush.bf16.msra.mxu0 0
    %285 = vmatpush.bf16.msra.mxu0 0
    %286 = vmatpush.bf16.msra.mxu0 %v273
    %287 = vmatpush.bf16.msra.mxu0 %v272
    %288 = vmatmul.bf16.gmra.mxu0 %v278
    %v289 = vpop.f32.mrf.mxu0
    %v290 = vadd.f32 %v262, %v289
    %v291 = vpop.f32.mrf.mxu0
    %v292 = vadd.f32 %v262, %v291
    %293 = vdwg.mxu0
    %296 = vrot.lane.b32.xlu0 %v290, 120
    %v297 = vpop.permute.xlu0 %296
    %298 = vrot.lane.b32.xlu0 %v292, 120
    %v299 = vpop.permute.xlu0 %298
    %302 = vrot.lane.b32.xlu0 %v290, 112
    %v303 = vpop.permute.xlu0 %302
    %304 = vrot.lane.b32.xlu0 %v292, 112
    %v305 = vpop.permute.xlu0 %304
    %308 = vrot.lane.b32.xlu0 %v290, 104
    %v309 = vpop.permute.xlu0 %308
    %310 = vrot.lane.b32.xlu0 %v292, 104
    %v311 = vpop.permute.xlu0 %310
    %s314 = sld [smem:[#allocation8]]
    %v315 = vpack.c.bf16 %v290, %v290
    %v316 = vpack.c.bf16 %v292, %v292
    %v317 = vpack.c.bf16 %v297, %v297
    %v318 = vpack.c.bf16 %v299, %v299
    %v319 = vpack.c.bf16 %v303, %v303
    %v320 = vpack.c.bf16 %v305, %v305
    %v321 = vpack.c.bf16 %v309, %v309
    %v322 = vpack.c.bf16 %v311, %v311
    %v323 = vstv %s314
    %v324 = vmul.f32 %v323, %v212
    %v325 = vmul.f32 %v323, %v235
    %v327 = vunpack.c.l.b16 %v315
    %v328 = vpack.c.b16 %v327, %v327
    %329 = vrot.lane.b32.xlu0 %v328, 96
    %v330 = vpop.permute.xlu0 %329
    %vm331 = vcmask 64512
    %v333 = vsel %vm331, %v315, 0
    %v336 = vsel %vm331, %v330, 0
    %338 = vmatpush.bf16.xpose.msra.mxu0 0
    %339 = vmatpush.bf16.xpose.msra.mxu0 0
    %340 = vmatpush.bf16.xpose.msra.mxu0 0
    %341 = vmatpush.bf16.xpose.msra.mxu0 0
    %342 = vmatpush.bf16.xpose.msra.mxu0 0
    %343 = vmatpush.bf16.xpose.msra.mxu0 0
    %344 = vmatpush.bf16.xpose.msra.mxu0 0
    %345 = vmatpush.bf16.xpose.msra.mxu0 %v336
    %346 = vmatmul.bf16.gmra.mxu0 %v333
    %v347 = vpop.f32.mrf.mxu0
    %v348 = vadd.f32 %v324, %v347
    %v349 = vpop.f32.mrf.mxu0
    %350 = vdwg.mxu0
    %v352 = vunpack.c.l.b16 %v316
    %v353 = vpack.c.b16 %v352, %v352
    %354 = vrot.lane.b32.xlu0 %v353, 96
    %v355 = vpop.permute.xlu0 %354
    %v357 = vsel %vm331, %v316, 0
    %v360 = vsel %vm331, %v355, 0
    %362 = vmatpush.bf16.xpose.msra.mxu0 0
    %363 = vmatpush.bf16.xpose.msra.mxu0 0
    %364 = vmatpush.bf16.xpose.msra.mxu0 0
    %365 = vmatpush.bf16.xpose.msra.mxu0 0
    %366 = vmatpush.bf16.xpose.msra.mxu0 0
    %367 = vmatpush.bf16.xpose.msra.mxu0 0
    %368 = vmatpush.bf16.xpose.msra.mxu0 0
    %369 = vmatpush.bf16.xpose.msra.mxu0 %v360
    %370 = vmatmul.bf16.gmra.mxu0 %v357
    %v371 = vpop.f32.mrf.mxu0
    %v372 = vadd.f32 %v325, %v371
    %v373 = vpop.f32.mrf.mxu0
    %374 = vdwg.mxu0
    %v376 = vunpack.c.l.b16 %v317
    %v377 = vpack.c.b16 %v376, %v376
    %378 = vrot.lane.b32.xlu0 %v377, 96
    %v379 = vpop.permute.xlu0 %378
    %v381 = vsel %vm331, %v317, 0
    %v384 = vsel %vm331, %v379, 0
    %386 = vmatpush.bf16.xpose.msra.mxu0 0
    %387 = vmatpush.bf16.xpose.msra.mxu0 0
    %388 = vmatpush.bf16.xpose.msra.mxu0 0
    %389 = vmatpush.bf16.xpose.msra.mxu0 0
    %390 = vmatpush.bf16.xpose.msra.mxu0 0
    %391 = vmatpush.bf16.xpose.msra.mxu0 0
    %392 = vmatpush.bf16.xpose.msra.mxu0 0
    %393 = vmatpush.bf16.xpose.msra.mxu0 %v384
    %394 = vmatmul.bf16.gmra.mxu0 %v381
    %v395 = vpop.f32.mrf.mxu0
    %v396 = vadd.f32 %v324, %v395
    %v397 = vpop.f32.mrf.mxu0
    %398 = vdwg.mxu0
    %v400 = vunpack.c.l.b16 %v318
    %v401 = vpack.c.b16 %v400, %v400
    %402 = vrot.lane.b32.xlu0 %v401, 96
    %v403 = vpop.permute.xlu0 %402
    %v405 = vsel %vm331, %v318, 0
    %v408 = vsel %vm331, %v403, 0
    %410 = vmatpush.bf16.xpose.msra.mxu0 0
    %411 = vmatpush.bf16.xpose.msra.mxu0 0
    %412 = vmatpush.bf16.xpose.msra.mxu0 0
    %413 = vmatpush.bf16.xpose.msra.mxu0 0
    %414 = vmatpush.bf16.xpose.msra.mxu0 0
    %415 = vmatpush.bf16.xpose.msra.mxu0 0
    %416 = vmatpush.bf16.xpose.msra.mxu0 0
    %417 = vmatpush.bf16.xpose.msra.mxu0 %v408
    %418 = vmatmul.bf16.gmra.mxu0 %v405
    %v419 = vpop.f32.mrf.mxu0
    %v420 = vadd.f32 %v325, %v419
    %v421 = vpop.f32.mrf.mxu0
    %422 = vdwg.mxu0
    %v424 = vunpack.c.l.b16 %v319
    %v425 = vpack.c.b16 %v424, %v424
    %426 = vrot.lane.b32.xlu0 %v425, 96
    %v427 = vpop.permute.xlu0 %426
    %v429 = vsel %vm331, %v319, 0
    %v432 = vsel %vm331, %v427, 0
    %434 = vmatpush.bf16.xpose.msra.mxu0 0
    %435 = vmatpush.bf16.xpose.msra.mxu0 0
    %436 = vmatpush.bf16.xpose.msra.mxu0 0
    %437 = vmatpush.bf16.xpose.msra.mxu0 0
    %438 = vmatpush.bf16.xpose.msra.mxu0 0
    %439 = vmatpush.bf16.xpose.msra.mxu0 0
    %440 = vmatpush.bf16.xpose.msra.mxu0 0
    %441 = vmatpush.bf16.xpose.msra.mxu0 %v432
    %442 = vmatmul.bf16.gmra.mxu0 %v429
    %v443 = vpop.f32.mrf.mxu0
    %v444 = vadd.f32 %v324, %v443
    %v445 = vpop.f32.mrf.mxu0
    %446 = vdwg.mxu0
    %v448 = vunpack.c.l.b16 %v320
    %v449 = vpack.c.b16 %v448, %v448
    %450 = vrot.lane.b32.xlu0 %v449, 96
    %v451 = vpop.permute.xlu0 %450
    %v453 = vsel %vm331, %v320, 0
    %v456 = vsel %vm331, %v451, 0
    %458 = vmatpush.bf16.xpose.msra.mxu0 0
    %459 = vmatpush.bf16.xpose.msra.mxu0 0
    %460 = vmatpush.bf16.xpose.msra.mxu0 0
    %461 = vmatpush.bf16.xpose.msra.mxu0 0
    %462 = vmatpush.bf16.xpose.msra.mxu0 0
    %463 = vmatpush.bf16.xpose.msra.mxu0 0
    %464 = vmatpush.bf16.xpose.msra.mxu0 0
    %465 = vmatpush.bf16.xpose.msra.mxu0 %v456
    %466 = vmatmul.bf16.gmra.mxu0 %v453
    %v467 = vpop.f32.mrf.mxu0
    %v468 = vadd.f32 %v325, %v467
    %v469 = vpop.f32.mrf.mxu0
    %470 = vdwg.mxu0
    %v472 = vunpack.c.l.b16 %v321
    %v473 = vpack.c.b16 %v472, %v472
    %474 = vrot.lane.b32.xlu0 %v473, 96
    %v475 = vpop.permute.xlu0 %474
    %v477 = vsel %vm331, %v321, 0
    %v480 = vsel %vm331, %v475, 0
    %482 = vmatpush.bf16.xpose.msra.mxu0 0
    %483 = vmatpush.bf16.xpose.msra.mxu0 0
    %484 = vmatpush.bf16.xpose.msra.mxu0 0
    %485 = vmatpush.bf16.xpose.msra.mxu0 0
    %486 = vmatpush.bf16.xpose.msra.mxu0 0
    %487 = vmatpush.bf16.xpose.msra.mxu0 0
    %488 = vmatpush.bf16.xpose.msra.mxu0 0
    %489 = vmatpush.bf16.xpose.msra.mxu0 %v480
    %490 = vmatmul.bf16.gmra.mxu0 %v477
    %v491 = vpop.f32.mrf.mxu0
    %v492 = vadd.f32 %v324, %v491
    %v493 = vpop.f32.mrf.mxu0
    %494 = vdwg.mxu0
    %v496 = vunpack.c.l.b16 %v322
    %v497 = vpack.c.b16 %v496, %v496
    %498 = vrot.lane.b32.xlu0 %v497, 96
    %v499 = vpop.permute.xlu0 %498
    %v501 = vsel %vm331, %v322, 0
    %v504 = vsel %vm331, %v499, 0
    %506 = vmatpush.bf16.xpose.msra.mxu0 0
    %507 = vmatpush.bf16.xpose.msra.mxu0 0
    %508 = vmatpush.bf16.xpose.msra.mxu0 0
    %509 = vmatpush.bf16.xpose.msra.mxu0 0
    %510 = vmatpush.bf16.xpose.msra.mxu0 0
    %511 = vmatpush.bf16.xpose.msra.mxu0 0
    %512 = vmatpush.bf16.xpose.msra.mxu0 0
    %513 = vmatpush.bf16.xpose.msra.mxu0 %v504
    %514 = vmatmul.bf16.gmra.mxu0 %v501
    %v515 = vpop.f32.mrf.mxu0
    %v516 = vadd.f32 %v325, %v515
    %v517 = vpop.f32.mrf.mxu0
    %518 = vdwg.mxu0
    %v519 = vsel %vm331, %v348, -inf
    %520 = vmax.xlane.f32.xlu0 %v519
    %v521 = vpop.xlane.xlu0 %520
    %v522 = vsel %vm331, %v372, -inf
    %523 = vmax.xlane.f32.xlu0 %v522
    %v524 = vpop.xlane.xlu0 %523
    %v525 = vsel %vm331, %v396, -inf
    %526 = vmax.xlane.f32.xlu0 %v525
    %v527 = vpop.xlane.xlu0 %526
    %v528 = vsel %vm331, %v420, -inf
    %529 = vmax.xlane.f32.xlu0 %v528
    %v530 = vpop.xlane.xlu0 %529
    %v531 = vsel %vm331, %v444, -inf
    %532 = vmax.xlane.f32.xlu0 %v531
    %v533 = vpop.xlane.xlu0 %532
    %v534 = vsel %vm331, %v468, -inf
    %535 = vmax.xlane.f32.xlu0 %v534
    %v536 = vpop.xlane.xlu0 %535
    %v537 = vsel %vm331, %v492, -inf
    %538 = vmax.xlane.f32.xlu0 %v537
    %v539 = vpop.xlane.xlu0 %538
    %v540 = vsel %vm331, %v516, -inf
    %541 = vmax.xlane.f32.xlu0 %v540
    %v542 = vpop.xlane.xlu0 %541
    %v543 = vsub.f32 %v348, %v521
    %v544 = vsub.f32 %v372, %v524
    %v545 = vsub.f32 %v396, %v527
    %v546 = vsub.f32 %v420, %v530
    %v547 = vsub.f32 %v444, %v533
    %v548 = vsub.f32 %v468, %v536
    %v549 = vsub.f32 %v492, %v539
    %v550 = vsub.f32 %v516, %v542
    %v551 = vmul.f32 %v543, 1.442695
    %v552 = vpow.pop %v551
    %v553 = vmul.f32 %v544, 1.442695
    %v554 = vpow.pop %v553
    %v555 = vmul.f32 %v545, 1.442695
    %v556 = vpow.pop %v555
    %v557 = vmul.f32 %v546, 1.442695
    %v558 = vpow.pop %v557
    %v559 = vmul.f32 %v547, 1.442695
    %v560 = vpow.pop %v559
    %v561 = vmul.f32 %v548, 1.442695
    %v562 = vpow.pop %v561
    %v563 = vmul.f32 %v549, 1.442695
    %v564 = vpow.pop %v563
    %v565 = vmul.f32 %v550, 1.442695
    %v566 = vpow.pop %v565
    %v567 = vsel %vm331, %v552, 0.0
    %568 = vadd.xlane.f32.xlu0 %v567
    %v569 = vpop.xlane.xlu0 %568
    %v570 = vsel %vm331, %v554, 0.0
    %571 = vadd.xlane.f32.xlu0 %v570
    %v572 = vpop.xlane.xlu0 %571
    %v573 = vsel %vm331, %v556, 0.0
    %574 = vadd.xlane.f32.xlu0 %v573
    %v575 = vpop.xlane.xlu0 %574
    %v576 = vsel %vm331, %v558, 0.0
    %577 = vadd.xlane.f32.xlu0 %v576
    %v578 = vpop.xlane.xlu0 %577
    %v579 = vsel %vm331, %v560, 0.0
    %580 = vadd.xlane.f32.xlu0 %v579
    %v581 = vpop.xlane.xlu0 %580
    %v582 = vsel %vm331, %v562, 0.0
    %583 = vadd.xlane.f32.xlu0 %v582
    %v584 = vpop.xlane.xlu0 %583
    %v585 = vsel %vm331, %v564, 0.0
    %586 = vadd.xlane.f32.xlu0 %v585
    %v587 = vpop.xlane.xlu0 %586
    %v588 = vsel %vm331, %v566, 0.0
    %589 = vadd.xlane.f32.xlu0 %v588
    %v590 = vpop.xlane.xlu0 %589
    %v591 = vrcp.pop %v569
    %v592 = vrcp.pop %v572
    %v593 = vrcp.pop %v575
    %v594 = vrcp.pop %v578
    %v595 = vrcp.pop %v581
    %v596 = vrcp.pop %v584
    %v597 = vrcp.pop %v587
    %v598 = vrcp.pop %v590
    %v599 = vmul.f32 %v552, %v591
    %v600 = vmul.f32 %v554, %v592
    %v601 = vmul.f32 %v556, %v593
    %v602 = vmul.f32 %v558, %v594
    %v603 = vmul.f32 %v560, %v595
    %v604 = vmul.f32 %v562, %v596
    %v605 = vmul.f32 %v564, %v597
    %v606 = vmul.f32 %v566, %v598
    %v607 = vpack.c.bf16 %v599, %v599
    %v608 = vpack.c.bf16 %v600, %v600
    %v609 = vpack.c.bf16 %v601, %v601
    %v610 = vpack.c.bf16 %v602, %v602
    %v611 = vpack.c.bf16 %v603, %v603
    %v612 = vpack.c.bf16 %v604, %v604
    %v613 = vpack.c.bf16 %v605, %v605
    %v614 = vpack.c.bf16 %v606, %v606
    %615 = vrot.lane.b32.xlu0 %v328, 64
    %v616 = vpop.permute.xlu0 %615
    %v618 = vsel %vm331, %v607, 0
    %vm620 = vcmask 1043456
    %v622 = vsel %vm620, %v616, 0
    %624 = vmatpush.bf16.msra.mxu0 0
    %625 = vmatpush.bf16.msra.mxu0 0
    %626 = vmatpush.bf16.msra.mxu0 0
    %627 = vmatpush.bf16.msra.mxu0 0
    %628 = vmatpush.bf16.msra.mxu0 0
    %629 = vmatpush.bf16.msra.mxu0 0
    %630 = vmatpush.bf16.msra.mxu0 0
    %631 = vmatpush.bf16.msra.mxu0 %v622
    %632 = vmatmul.bf16.gmra.mxu0 %v618
    %v633 = vpop.f32.mrf.mxu0
    %v634 = vadd.f32 0.0, %v633
    %v635 = vpop.f32.mrf.mxu0
    %636 = vdwg.mxu0
    %637 = vrot.lane.b32.xlu0 %v353, 64
    %v638 = vpop.permute.xlu0 %637
    %v640 = vsel %vm331, %v608, 0
    %v643 = vsel %vm620, %v638, 0
    %645 = vmatpush.bf16.msra.mxu0 0
    %646 = vmatpush.bf16.msra.mxu0 0
    %647 = vmatpush.bf16.msra.mxu0 0
    %648 = vmatpush.bf16.msra.mxu0 0
    %649 = vmatpush.bf16.msra.mxu0 0
    %650 = vmatpush.bf16.msra.mxu0 0
    %651 = vmatpush.bf16.msra.mxu0 0
    %652 = vmatpush.bf16.msra.mxu0 %v643
    %653 = vmatmul.bf16.gmra.mxu0 %v640
    %v654 = vpop.f32.mrf.mxu0
    %v655 = vadd.f32 0.0, %v654
    %v656 = vpop.f32.mrf.mxu0
    %657 = vdwg.mxu0
    %658 = vrot.lane.b32.xlu0 %v377, 64
    %v659 = vpop.permute.xlu0 %658
    %v661 = vsel %vm331, %v609, 0
    %v664 = vsel %vm620, %v659, 0
    %666 = vmatpush.bf16.msra.mxu0 0
    %667 = vmatpush.bf16.msra.mxu0 0
    %668 = vmatpush.bf16.msra.mxu0 0
    %669 = vmatpush.bf16.msra.mxu0 0
    %670 = vmatpush.bf16.msra.mxu0 0
    %671 = vmatpush.bf16.msra.mxu0 0
    %672 = vmatpush.bf16.msra.mxu0 0
    %673 = vmatpush.bf16.msra.mxu0 %v664
    %674 = vmatmul.bf16.gmra.mxu0 %v661
    %v675 = vpop.f32.mrf.mxu0
    %v676 = vadd.f32 0.0, %v675
    %v677 = vpop.f32.mrf.mxu0
    %678 = vdwg.mxu0
    %679 = vrot.lane.b32.xlu0 %v401, 64
    %v680 = vpop.permute.xlu0 %679
    %v682 = vsel %vm331, %v610, 0
    %v685 = vsel %vm620, %v680, 0
    %687 = vmatpush.bf16.msra.mxu0 0
    %688 = vmatpush.bf16.msra.mxu0 0
    %689 = vmatpush.bf16.msra.mxu0 0
    %690 = vmatpush.bf16.msra.mxu0 0
    %691 = vmatpush.bf16.msra.mxu0 0
    %692 = vmatpush.bf16.msra.mxu0 0
    %693 = vmatpush.bf16.msra.mxu0 0
    %694 = vmatpush.bf16.msra.mxu0 %v685
    %695 = vmatmul.bf16.gmra.mxu0 %v682
    %v696 = vpop.f32.mrf.mxu0
    %v697 = vadd.f32 0.0, %v696
    %v698 = vpop.f32.mrf.mxu0
    %699 = vdwg.mxu0
    %700 = vrot.lane.b32.xlu0 %v425, 64
    %v701 = vpop.permute.xlu0 %700
    %v703 = vsel %vm331, %v611, 0
    %v706 = vsel %vm620, %v701, 0
    %708 = vmatpush.bf16.msra.mxu0 0
    %709 = vmatpush.bf16.msra.mxu0 0
    %710 = vmatpush.bf16.msra.mxu0 0
    %711 = vmatpush.bf16.msra.mxu0 0
    %712 = vmatpush.bf16.msra.mxu0 0
    %713 = vmatpush.bf16.msra.mxu0 0
    %714 = vmatpush.bf16.msra.mxu0 0
    %715 = vmatpush.bf16.msra.mxu0 %v706
    %716 = vmatmul.bf16.gmra.mxu0 %v703
    %v717 = vpop.f32.mrf.mxu0
    %v718 = vadd.f32 0.0, %v717
    %v719 = vpop.f32.mrf.mxu0
    %720 = vdwg.mxu0
    %721 = vrot.lane.b32.xlu0 %v449, 64
    %v722 = vpop.permute.xlu0 %721
    %v724 = vsel %vm331, %v612, 0
    %v727 = vsel %vm620, %v722, 0
    %729 = vmatpush.bf16.msra.mxu0 0
    %730 = vmatpush.bf16.msra.mxu0 0
    %731 = vmatpush.bf16.msra.mxu0 0
    %732 = vmatpush.bf16.msra.mxu0 0
    %733 = vmatpush.bf16.msra.mxu0 0
    %734 = vmatpush.bf16.msra.mxu0 0
    %735 = vmatpush.bf16.msra.mxu0 0
    %736 = vmatpush.bf16.msra.mxu0 %v727
    %737 = vmatmul.bf16.gmra.mxu0 %v724
    %v738 = vpop.f32.mrf.mxu0
    %v739 = vadd.f32 0.0, %v738
    %v740 = vpop.f32.mrf.mxu0
    %741 = vdwg.mxu0
    %742 = vrot.lane.b32.xlu0 %v473, 64
    %v743 = vpop.permute.xlu0 %742
    %v745 = vsel %vm331, %v613, 0
    %v748 = vsel %vm620, %v743, 0
    %750 = vmatpush.bf16.msra.mxu0 0
    %751 = vmatpush.bf16.msra.mxu0 0
    %752 = vmatpush.bf16.msra.mxu0 0
    %753 = vmatpush.bf16.msra.mxu0 0
    %754 = vmatpush.bf16.msra.mxu0 0
    %755 = vmatpush.bf16.msra.mxu0 0
    %756 = vmatpush.bf16.msra.mxu0 0
    %757 = vmatpush.bf16.msra.mxu0 %v748
    %758 = vmatmul.bf16.gmra.mxu0 %v745
    %v759 = vpop.f32.mrf.mxu0
    %v760 = vadd.f32 0.0, %v759
    %v761 = vpop.f32.mrf.mxu0
    %762 = vdwg.mxu0
    %763 = vrot.lane.b32.xlu0 %v497, 64
    %v764 = vpop.permute.xlu0 %763
    %v766 = vsel %vm331, %v614, 0
    %v769 = vsel %vm620, %v764, 0
    %771 = vmatpush.bf16.msra.mxu0 0
    %772 = vmatpush.bf16.msra.mxu0 0
    %773 = vmatpush.bf16.msra.mxu0 0
    %774 = vmatpush.bf16.msra.mxu0 0
    %775 = vmatpush.bf16.msra.mxu0 0
    %776 = vmatpush.bf16.msra.mxu0 0
    %777 = vmatpush.bf16.msra.mxu0 0
    %778 = vmatpush.bf16.msra.mxu0 %v769
    %779 = vmatmul.bf16.gmra.mxu0 %v766
    %v780 = vpop.f32.mrf.mxu0
    %v781 = vadd.f32 0.0, %v780
    %v782 = vpop.f32.mrf.mxu0
    %783 = vdwg.mxu0
    %786 = vrot.lane.b32.xlu0 %v676, 8
    %v787 = vpop.permute.xlu0 %786
    %788 = vrot.lane.b32.xlu0 %v697, 8
    %v789 = vpop.permute.xlu0 %788
    %794 = vrot.lane.b32.xlu0 %v718, 16
    %v795 = vpop.permute.xlu0 %794
    %796 = vrot.lane.b32.xlu0 %v739, 16
    %v797 = vpop.permute.xlu0 %796
    %802 = vrot.lane.b32.xlu0 %v760, 24
    %v803 = vpop.permute.xlu0 %802
    %804 = vrot.lane.b32.xlu0 %v781, 24
    %v805 = vpop.permute.xlu0 %804
    %v808 = vsel %vm331, %v634, %v787
    %v809 = vsel %vm331, %v655, %v789
    %v810 = vsel %vm128, %v808, %v795
    %v811 = vsel %vm128, %v809, %v797
    %vm812 = vcmask 195584
    %v813 = vsel %vm812, %v810, %v803
    %v814 = vsel %vm812, %v811, %v805
    %v815 = vpack.c.bf16 %v814, %v813
    %v816 = vld [vmem:[%s4] sm:$0xf]
    %v817 = vld [vmem:[%s4 + $0x4] sm:$0xf]
    %v818 = vld [vmem:[%s4 + $0x8] sm:$0xf]
    %v819 = vld [vmem:[%s4 + $0xc] sm:$0xf]
    %v820 = vld [vmem:[%s5] sm:$0x1]
    %v822 = vperm.slane %v820, 0
    %v828 = vunpack.c.l.b16 %v816
    %v829 = vunpack.c.l.b16 %v817
    %v830 = vunpack.c.l.b16 %v818
    %v831 = vunpack.c.l.b16 %v819
    %v832 = vpack.c.b16 %v829, %v828
    %v833 = vpack.c.b16 %v831, %v830
    %v837 = vsel %vm276, %v815, 0
    %839 = vmatpush.bf16.msra.mxu0 0
    %840 = vmatpush.bf16.msra.mxu0 0
    %841 = vmatpush.bf16.msra.mxu0 0
    %842 = vmatpush.bf16.msra.mxu0 0
    %843 = vmatpush.bf16.msra.mxu0 0
    %844 = vmatpush.bf16.msra.mxu0 0
    %845 = vmatpush.bf16.msra.mxu0 %v833
    %846 = vmatpush.bf16.msra.mxu0 %v832
    %847 = vmatmul.bf16.gmra.mxu0 %v837
    %v848 = vpop.f32.mrf.mxu0
    %v849 = vadd.f32 %v822, %v848
    %v850 = vpop.f32.mrf.mxu0
    %v851 = vadd.f32 %v822, %v850
    %852 = vdwg.mxu0
    %v861 = vrot.slane %v600, 7
    %vm862 = vcmask 1041409
    %v863 = vsel %vm862, %v861, %v599
    %v864 = vrot.slane %v601, 6
    %vm865 = vcmask 1042434
    %v866 = vsel %vm865, %v864, %v863
    %v867 = vrot.slane %v602, 5
    %vm868 = vcmask 1043459
    %v869 = vsel %vm868, %v867, %v866
    %v870 = vrot.slane %v603, 4
    %vm871 = vcmask 1044484
    %v872 = vsel %vm871, %v870, %v869
    %v873 = vrot.slane %v604, 3
    %vm874 = vcmask 1045509
    %v875 = vsel %vm874, %v873, %v872
    %v876 = vrot.slane %v605, 2
    %vm877 = vcmask 1046534
    %v878 = vsel %vm877, %v876, %v875
    %v879 = vrot.slane %v606, 1
    %vm880 = vcmask 1047559
    %v881 = vsel %vm880, %v879, %v878
    %v883 = vrot.slane %v599, 1
    %v884 = vsel %vm862, %v600, %v883
    %v885 = vrot.slane %v601, 7
    %v886 = vsel %vm865, %v885, %v884
    %v887 = vrot.slane %v602, 6
    %v888 = vsel %vm868, %v887, %v886
    %v889 = vrot.slane %v603, 5
    %v890 = vsel %vm871, %v889, %v888
    %v891 = vrot.slane %v604, 4
    %v892 = vsel %vm874, %v891, %v890
    %v893 = vrot.slane %v605, 3
    %v894 = vsel %vm877, %v893, %v892
    %v895 = vrot.slane %v606, 2
    %v896 = vsel %vm880, %v895, %v894
    %897 = vrot.lane.b32.xlu0 %v896, 8
    %v898 = vpop.permute.xlu0 %897
    %v900 = vrot.slane %v599, 2
    %v901 = vrot.slane %v600, 1
    %v902 = vsel %vm862, %v901, %v900
    %v903 = vsel %vm865, %v601, %v902
    %v904 = vrot.slane %v602, 7
    %v905 = vsel %vm868, %v904, %v903
    %v906 = vrot.slane %v603, 6
    %v907 = vsel %vm871, %v906, %v905
    %v908 = vrot.slane %v604, 5
    %v909 = vsel %vm874, %v908, %v907
    %v910 = vrot.slane %v605, 4
    %v911 = vsel %vm877, %v910, %v909
    %v912 = vrot.slane %v606, 3
    %v913 = vsel %vm880, %v912, %v911
    %914 = vrot.lane.b32.xlu0 %v913, 16
    %v915 = vpop.permute.xlu0 %914
    %v917 = vrot.slane %v599, 3
    %v918 = vrot.slane %v600, 2
    %v919 = vsel %vm862, %v918, %v917
    %v920 = vrot.slane %v601, 1
    %v921 = vsel %vm865, %v920, %v919
    %v922 = vsel %vm868, %v602, %v921
    %v923 = vrot.slane %v603, 7
    %v924 = vsel %vm871, %v923, %v922
    %v925 = vrot.slane %v604, 6
    %v926 = vsel %vm874, %v925, %v924
    %v927 = vrot.slane %v605, 5
    %v928 = vsel %vm877, %v927, %v926
    %v929 = vrot.slane %v606, 4
    %v930 = vsel %vm880, %v929, %v928
    %931 = vrot.lane.b32.xlu0 %v930, 24
    %v932 = vpop.permute.xlu0 %931
    %v934 = vrot.slane %v599, 4
    %v935 = vrot.slane %v600, 3
    %v936 = vsel %vm862, %v935, %v934
    %v937 = vrot.slane %v601, 2
    %v938 = vsel %vm865, %v937, %v936
    %v939 = vrot.slane %v602, 1
    %v940 = vsel %vm868, %v939, %v938
    %v941 = vsel %vm871, %v603, %v940
    %v942 = vrot.slane %v604, 7
    %v943 = vsel %vm874, %v942, %v941
    %v944 = vrot.slane %v605, 6
    %v945 = vsel %vm877, %v944, %v943
    %v946 = vrot.slane %v606, 5
    %v947 = vsel %vm880, %v946, %v945
    %948 = vrot.lane.b32.xlu0 %v947, 32
    %v949 = vpop.permute.xlu0 %948
    %v951 = vrot.slane %v599, 5
    %v952 = vrot.slane %v600, 4
    %v953 = vsel %vm862, %v952, %v951
    %v954 = vrot.slane %v601, 3
    %v955 = vsel %vm865, %v954, %v953
    %v956 = vrot.slane %v602, 2
    %v957 = vsel %vm868, %v956, %v955
    %v958 = vrot.slane %v603, 1
    %v959 = vsel %vm871, %v958, %v957
    %v960 = vsel %vm874, %v604, %v959
    %v961 = vrot.slane %v605, 7
    %v962 = vsel %vm877, %v961, %v960
    %v963 = vrot.slane %v606, 6
    %v964 = vsel %vm880, %v963, %v962
    %965 = vrot.lane.b32.xlu0 %v964, 40
    %v966 = vpop.permute.xlu0 %965
    %v968 = vrot.slane %v599, 6
    %v969 = vrot.slane %v600, 5
    %v970 = vsel %vm862, %v969, %v968
    %v971 = vrot.slane %v601, 4
    %v972 = vsel %vm865, %v971, %v970
    %v973 = vrot.slane %v602, 3
    %v974 = vsel %vm868, %v973, %v972
    %v975 = vrot.slane %v603, 2
    %v976 = vsel %vm871, %v975, %v974
    %v977 = vrot.slane %v604, 1
    %v978 = vsel %vm874, %v977, %v976
    %v979 = vsel %vm877, %v605, %v978
    %v980 = vrot.slane %v606, 7
    %v981 = vsel %vm880, %v980, %v979
    %982 = vrot.lane.b32.xlu0 %v981, 48
    %v983 = vpop.permute.xlu0 %982
    %v985 = vrot.slane %v599, 7
    %v986 = vrot.slane %v600, 6
    %v987 = vsel %vm862, %v986, %v985
    %v988 = vrot.slane %v601, 5
    %v989 = vsel %vm865, %v988, %v987
    %v990 = vrot.slane %v602, 4
    %v991 = vsel %vm868, %v990, %v989
    %v992 = vrot.slane %v603, 3
    %v993 = vsel %vm871, %v992, %v991
    %v994 = vrot.slane %v604, 2
    %v995 = vsel %vm874, %v994, %v993
    %v996 = vrot.slane %v605, 1
    %v997 = vsel %vm877, %v996, %v995
    %v998 = vsel %vm880, %v606, %v997
    %999 = vrot.lane.b32.xlu0 %v998, 56
    %v1000 = vpop.permute.xlu0 %999
    %v1002 = vsel %vm331, %v881, %v898
    %v1003 = vsel %vm128, %v1002, %v915
    %v1004 = vsel %vm812, %v1003, %v932
    %v1005 = vsel %vm276, %v1004, %v949
    %vm1006 = vcmask 326656
    %v1007 = vsel %vm1006, %v1005, %v966
    %vm1008 = vcmask 392192
    %v1009 = vsel %vm1008, %v1007, %v983
    %vm1010 = vcmask 457728
    %v1011 = vsel %vm1010, %v1009, %v1000
    %v1013 = vrot.slane %v1011, 2
    %1014 = vrot.lane.b32.xlu0 %v1013, 64
    %v1015 = vpop.permute.xlu0 %1014
    %v1017 = vrot.slane %v1011, 4
    %v1019 = vrot.slane %v1011, 6
    %1020 = vrot.lane.b32.xlu0 %v1019, 64
    %v1021 = vpop.permute.xlu0 %1020
    %vm1023 = vcmask 523264
    %v1024 = vsel %vm1023, %v1011, %v1015
    %v1025 = vsel %vm1023, %v1017, %v1021
    %v1028 = vrot.slane %v1025, 6
    %vm1029 = vcmask 1041408
    %v1030 = vsel %vm1029, %v1024, %v1028
    %1032 = vst [vmem:[#allocation13] sm:$0xf] %v1030
    %v1033 = vadd.f32 %v122, %v849
    %v1034 = vadd.f32 %v123, %v851
    %v1035 = vsel %vm276, %v1033, 0.0
    %1036 = vadd.xlane.f32.xlu0 %v1035
    %v1037 = vpop.xlane.xlu0 %1036
    %v1038 = vsel %vm276, %v1034, 0.0
    %1039 = vadd.xlane.f32.xlu0 %v1038
    %v1040 = vpop.xlane.xlu0 %1039
    %v1041 = vrcp.pop 32.0
    %v1042 = vmul.f32 32.0, %v1041
    %v1043 = vsub.f32 1.0, %v1042
    %v1044 = vmul.f32 %v1041, %v1043
    %v1045 = vadd.f32 %v1041, %v1044
    %vm1046 = vweird.f32 %v1041
    %v1047 = vsel %vm1046, %v1041, %v1045
    %v1048 = vmul.f32 %v1037, %v1047
    %v1049 = vmul.f32 %v1040, %v1047
    %v1050 = vsub.f32 %v1033, %v1048
    %v1051 = vsub.f32 %v1034, %v1049
    %v1052 = vmul.f32 %v1050, %v1050
    %v1053 = vmul.f32 %v1051, %v1051
    %v1054 = vsel %vm276, %v1052, 0.0
    %1055 = vadd.xlane.f32.xlu0 %v1054
    %v1056 = vpop.xlane.xlu0 %1055
    %v1057 = vsel %vm276, %v1053, 0.0
    %1058 = vadd.xlane.f32.xlu0 %v1057
    %v1059 = vpop.xlane.xlu0 %1058
    %v1060 = vmul.f32 %v1056, %v1047
    %v1061 = vmul.f32 %v1059, %v1047
    %v1062 = vadd.f32 %v1060, 1e-05
    %v1063 = vadd.f32 %v1061, 1e-05
    %v1064 = vrsqrt.pop %v1062
    %v1065 = vmul.f32 %v1064, %v1062
    %v1066 = vmul.f32 %v1065, %v1064
    %v1067 = vmul.f32 0.5, %v1066
    %v1068 = vsub.f32 1.5, %v1067
    %v1069 = vmul.f32 %v1064, %v1068
    %vm1070 = vweird.f32 %v1062
    %vm1071 = vweird.f32 %v1064
    %vm1072 = vmor %vm1070, %vm1071
    %v1073 = vsel %vm1072, %v1064, %v1069
    %v1074 = vrsqrt.pop %v1063
    %v1075 = vmul.f32 %v1074, %v1063
    %v1076 = vmul.f32 %v1075, %v1074
    %v1077 = vmul.f32 0.5, %v1076
    %v1078 = vsub.f32 1.5, %v1077
    %v1079 = vmul.f32 %v1074, %v1078
    %vm1080 = vweird.f32 %v1063
    %vm1081 = vweird.f32 %v1074
    %vm1082 = vmor %vm1080, %vm1081
    %v1083 = vsel %vm1082, %v1074, %v1079
    %v1084 = vmul.f32 %v1050, %v1073
    %v1085 = vmul.f32 %v1051, %v1083
    %v1087 = vperm.slane %v237, 0
    %v1089 = vmul.f32 %v1084, %v1087
    %v1090 = vmul.f32 %v1085, %v1087
    %v1092 = vperm.slane %v238, 0
    %v1094 = vadd.f32 %v1089, %v1092
    %v1095 = vadd.f32 %v1090, %v1092
    %v1096 = vpack.c.bf16 %v1095, %v1094
    %v1098 = vperm.slane %v245, 0
    %v1104 = vunpack.c.l.b16 %v241
    %v1105 = vunpack.c.l.b16 %v242
    %v1106 = vunpack.c.l.b16 %v243
    %v1107 = vunpack.c.l.b16 %v244
    %v1108 = vpack.c.b16 %v1105, %v1104
    %v1109 = vpack.c.b16 %v1107, %v1106
    %v1113 = vsel %vm276, %v1096, 0
    %1115 = vmatpush.bf16.msra.mxu0 0
    %1116 = vmatpush.bf16.msra.mxu0 0
    %1117 = vmatpush.bf16.msra.mxu0 0
    %1118 = vmatpush.bf16.msra.mxu0 0
    %1119 = vmatpush.bf16.msra.mxu0 0
    %1120 = vmatpush.bf16.msra.mxu0 0
    %1121 = vmatpush.bf16.msra.mxu0 %v1109
    %1122 = vmatpush.bf16.msra.mxu0 %v1108
    %1123 = vmatmul.bf16.gmra.mxu0 %v1113
    %v1124 = vpop.f32.mrf.mxu0
    %v1125 = vadd.f32 %v1098, %v1124
    %v1126 = vpop.f32.mrf.mxu0
    %v1127 = vadd.f32 %v1098, %v1126
    %1128 = vdwg.mxu0
    %v1129 = vmax.f32 %v1125, 0.0
    %v1130 = vmax.f32 %v1127, 0.0
    %v1131 = vpack.c.bf16 %v1130, %v1129
    %v1133 = vperm.slane %v254, 0
    %v1143 = vunpack.c.l.b16 %v246
    %v1144 = vunpack.c.l.b16 %v247
    %v1145 = vunpack.c.l.b16 %v248
    %v1146 = vunpack.c.l.b16 %v249
    %v1147 = vunpack.c.l.b16 %v250
    %v1148 = vunpack.c.l.b16 %v251
    %v1149 = vunpack.c.l.b16 %v252
    %v1150 = vunpack.c.l.b16 %v253
    %v1151 = vpack.c.b16 %v1144, %v1143
    %v1152 = vpack.c.b16 %v1146, %v1145
    %v1153 = vpack.c.b16 %v1148, %v1147
    %v1154 = vpack.c.b16 %v1150, %v1149
    %v1160 = vsel %vm1023, %v1131, 0
    %1162 = vmatpush.bf16.msra.mxu0 0
    %1163 = vmatpush.bf16.msra.mxu0 0
    %1164 = vmatpush.bf16.msra.mxu0 0
    %1165 = vmatpush.bf16.msra.mxu0 0
    %1166 = vmatpush.bf16.msra.mxu0 %v1154
    %1167 = vmatpush.bf16.msra.mxu0 %v1153
    %1168 = vmatpush.bf16.msra.mxu0 %v1152
    %1169 = vmatpush.bf16.msra.mxu0 %v1151
    %1170 = vmatmul.bf16.gmra.mxu0 %v1160
    %v1171 = vpop.f32.mrf.mxu0
    %v1172 = vadd.f32 %v1133, %v1171
    %v1173 = vpop.f32.mrf.mxu0
    %v1174 = vadd.f32 %v1133, %v1173
    %1175 = vdwg.mxu0
    %v1176 = vadd.f32 %v1094, %v1172
    %v1177 = vadd.f32 %v1095, %v1174
    %v1178 = vsel %vm276, %v1176, 0.0
    %1179 = vadd.xlane.f32.xlu0 %v1178
    %v1180 = vpop.xlane.xlu0 %1179
    %v1181 = vsel %vm276, %v1177, 0.0
    %1182 = vadd.xlane.f32.xlu0 %v1181
    %v1183 = vpop.xlane.xlu0 %1182
    %v1184 = vmul.f32 %v1180, %v1047
    %v1185 = vmul.f32 %v1183, %v1047
    %v1186 = vsub.f32 %v1176, %v1184
    %v1187 = vsub.f32 %v1177, %v1185
    %v1188 = vmul.f32 %v1186, %v1186
    %v1189 = vmul.f32 %v1187, %v1187
    %v1190 = vsel %vm276, %v1188, 0.0
    %1191 = vadd.xlane.f32.xlu0 %v1190
    %v1192 = vpop.xlane.xlu0 %1191
    %v1193 = vsel %vm276, %v1189, 0.0
    %1194 = vadd.xlane.f32.xlu0 %v1193
    %v1195 = vpop.xlane.xlu0 %1194
    %v1196 = vmul.f32 %v1192, %v1047
    %v1197 = vmul.f32 %v1195, %v1047
    %v1198 = vadd.f32 %v1196, 1e-05
    %v1199 = vadd.f32 %v1197, 1e-05
    %v1200 = vrsqrt.pop %v1198
    %v1201 = vmul.f32 %v1200, %v1198
    %v1202 = vmul.f32 %v1201, %v1200
    %v1203 = vmul.f32 0.5, %v1202
    %v1204 = vsub.f32 1.5, %v1203
    %v1205 = vmul.f32 %v1200, %v1204
    %vm1206 = vweird.f32 %v1198
    %vm1207 = vweird.f32 %v1200
    %vm1208 = vmor %vm1206, %vm1207
    %v1209 = vsel %vm1208, %v1200, %v1205
    %v1210 = vrsqrt.pop %v1199
    %v1211 = vmul.f32 %v1210, %v1199
    %v1212 = vmul.f32 %v1211, %v1210
    %v1213 = vmul.f32 0.5, %v1212
    %v1214 = vsub.f32 1.5, %v1213
    %v1215 = vmul.f32 %v1210, %v1214
    %vm1216 = vweird.f32 %v1199
    %vm1217 = vweird.f32 %v1210
    %vm1218 = vmor %vm1216, %vm1217
    %v1219 = vsel %vm1218, %v1210, %v1215
    %v1220 = vmul.f32 %v1186, %v1209
    %v1221 = vmul.f32 %v1187, %v1219
    %v1223 = vperm.slane %v239, 0
    %v1225 = vmul.f32 %v1220, %v1223
    %v1226 = vmul.f32 %v1221, %v1223
    %v1228 = vperm.slane %v240, 0
    %v1230 = vadd.f32 %v1225, %v1228
    %v1231 = vadd.f32 %v1226, %v1228
    %v1232 = vpack.c.bf16 %v1231, %v1230
    %s1233 = scalar_lea.vmem %s2, 16
    %v1234 = vld [vmem:[%s1233] sm:$0xf]
    %v1235 = vld [vmem:[%s1233 + $0x4] sm:$0xf]
    %v1236 = vld [vmem:[%s1233 + $0x8] sm:$0xf]
    %v1237 = vld [vmem:[%s1233 + $0xc] sm:$0xf]
    %s1238 = scalar_lea.vmem %s3, 1
    %v1239 = vld [vmem:[%s1238] sm:$0x1]
    %v1241 = vperm.slane %v1239, 0
    %v1247 = vunpack.c.l.b16 %v1234
    %v1248 = vunpack.c.l.b16 %v1235
    %v1249 = vunpack.c.l.b16 %v1236
    %v1250 = vunpack.c.l.b16 %v1237
    %v1251 = vpack.c.b16 %v1248, %v1247
    %v1252 = vpack.c.b16 %v1250, %v1249
    %v1256 = vsel %vm276, %v1232, 0
    %1258 = vmatpush.bf16.msra.mxu0 0
    %1259 = vmatpush.bf16.msra.mxu0 0
    %1260 = vmatpush.bf16.msra.mxu0 0
    %1261 = vmatpush.bf16.msra.mxu0 0
    %1262 = vmatpush.bf16.msra.mxu0 0
    %1263 = vmatpush.bf16.msra.mxu0 0
    %1264 = vmatpush.bf16.msra.mxu0 %v1252
    %1265 = vmatpush.bf16.msra.mxu0 %v1251
    %1266 = vmatmul.bf16.gmra.mxu0 %v1256
    %v1267 = vpop.f32.mrf.mxu0
    %v1268 = vadd.f32 %v1241, %v1267
    %v1269 = vpop.f32.mrf.mxu0
    %v1270 = vadd.f32 %v1241, %v1269
    %1271 = vdwg.mxu0
    %1274 = vrot.lane.b32.xlu0 %v1268, 120
    %v1275 = vpop.permute.xlu0 %1274
    %1276 = vrot.lane.b32.xlu0 %v1270, 120
    %v1277 = vpop.permute.xlu0 %1276
    %1280 = vrot.lane.b32.xlu0 %v1268, 112
    %v1281 = vpop.permute.xlu0 %1280
    %1282 = vrot.lane.b32.xlu0 %v1270, 112
    %v1283 = vpop.permute.xlu0 %1282
    %1286 = vrot.lane.b32.xlu0 %v1268, 104
    %v1287 = vpop.permute.xlu0 %1286
    %1288 = vrot.lane.b32.xlu0 %v1270, 104
    %v1289 = vpop.permute.xlu0 %1288
    %s1292 = sld [smem:[#allocation8 + $0x1]]
    %v1293 = vpack.c.bf16 %v1268, %v1268
    %v1294 = vpack.c.bf16 %v1270, %v1270
    %v1295 = vpack.c.bf16 %v1275, %v1275
    %v1296 = vpack.c.bf16 %v1277, %v1277
    %v1297 = vpack.c.bf16 %v1281, %v1281
    %v1298 = vpack.c.bf16 %v1283, %v1283
    %v1299 = vpack.c.bf16 %v1287, %v1287
    %v1300 = vpack.c.bf16 %v1289, %v1289
    %v1301 = vstv %s1292
    %v1302 = vmul.f32 %v1301, %v212
    %v1303 = vmul.f32 %v1301, %v235
    %v1305 = vunpack.c.l.b16 %v1293
    %v1306 = vpack.c.b16 %v1305, %v1305
    %1307 = vrot.lane.b32.xlu0 %v1306, 96
    %v1308 = vpop.permute.xlu0 %1307
    %v1310 = vsel %vm331, %v1293, 0
    %v1313 = vsel %vm331, %v1308, 0
    %1315 = vmatpush.bf16.xpose.msra.mxu0 0
    %1316 = vmatpush.bf16.xpose.msra.mxu0 0
    %1317 = vmatpush.bf16.xpose.msra.mxu0 0
    %1318 = vmatpush.bf16.xpose.msra.mxu0 0
    %1319 = vmatpush.bf16.xpose.msra.mxu0 0
    %1320 = vmatpush.bf16.xpose.msra.mxu0 0
    %1321 = vmatpush.bf16.xpose.msra.mxu0 0
    %1322 = vmatpush.bf16.xpose.msra.mxu0 %v1313
    %1323 = vmatmul.bf16.gmra.mxu0 %v1310
    %v1324 = vpop.f32.mrf.mxu0
    %v1325 = vadd.f32 %v1302, %v1324
    %v1326 = vpop.f32.mrf.mxu0
    %1327 = vdwg.mxu0
    %v1329 = vunpack.c.l.b16 %v1294
    %v1330 = vpack.c.b16 %v1329, %v1329
    %1331 = vrot.lane.b32.xlu0 %v1330, 96
    %v1332 = vpop.permute.xlu0 %1331
    %v1334 = vsel %vm331, %v1294, 0
    %v1337 = vsel %vm331, %v1332, 0
    %1339 = vmatpush.bf16.xpose.msra.mxu0 0
    %1340 = vmatpush.bf16.xpose.msra.mxu0 0
    %1341 = vmatpush.bf16.xpose.msra.mxu0 0
    %1342 = vmatpush.bf16.xpose.msra.mxu0 0
    %1343 = vmatpush.bf16.xpose.msra.mxu0 0
    %1344 = vmatpush.bf16.xpose.msra.mxu0 0
    %1345 = vmatpush.bf16.xpose.msra.mxu0 0
    %1346 = vmatpush.bf16.xpose.msra.mxu0 %v1337
    %1347 = vmatmul.bf16.gmra.mxu0 %v1334
    %v1348 = vpop.f32.mrf.mxu0
    %v1349 = vadd.f32 %v1303, %v1348
    %v1350 = vpop.f32.mrf.mxu0
    %1351 = vdwg.mxu0
    %v1353 = vunpack.c.l.b16 %v1295
    %v1354 = vpack.c.b16 %v1353, %v1353
    %1355 = vrot.lane.b32.xlu0 %v1354, 96
    %v1356 = vpop.permute.xlu0 %1355
    %v1358 = vsel %vm331, %v1295, 0
    %v1361 = vsel %vm331, %v1356, 0
    %1363 = vmatpush.bf16.xpose.msra.mxu0 0
    %1364 = vmatpush.bf16.xpose.msra.mxu0 0
    %1365 = vmatpush.bf16.xpose.msra.mxu0 0
    %1366 = vmatpush.bf16.xpose.msra.mxu0 0
    %1367 = vmatpush.bf16.xpose.msra.mxu0 0
    %1368 = vmatpush.bf16.xpose.msra.mxu0 0
    %1369 = vmatpush.bf16.xpose.msra.mxu0 0
    %1370 = vmatpush.bf16.xpose.msra.mxu0 %v1361
    %1371 = vmatmul.bf16.gmra.mxu0 %v1358
    %v1372 = vpop.f32.mrf.mxu0
    %v1373 = vadd.f32 %v1302, %v1372
    %v1374 = vpop.f32.mrf.mxu0
    %1375 = vdwg.mxu0
    %v1377 = vunpack.c.l.b16 %v1296
    %v1378 = vpack.c.b16 %v1377, %v1377
    %1379 = vrot.lane.b32.xlu0 %v1378, 96
    %v1380 = vpop.permute.xlu0 %1379
    %v1382 = vsel %vm331, %v1296, 0
    %v1385 = vsel %vm331, %v1380, 0
    %1387 = vmatpush.bf16.xpose.msra.mxu0 0
    %1388 = vmatpush.bf16.xpose.msra.mxu0 0
    %1389 = vmatpush.bf16.xpose.msra.mxu0 0
    %1390 = vmatpush.bf16.xpose.msra.mxu0 0
    %1391 = vmatpush.bf16.xpose.msra.mxu0 0
    %1392 = vmatpush.bf16.xpose.msra.mxu0 0
    %1393 = vmatpush.bf16.xpose.msra.mxu0 0
    %1394 = vmatpush.bf16.xpose.msra.mxu0 %v1385
    %1395 = vmatmul.bf16.gmra.mxu0 %v1382
    %v1396 = vpop.f32.mrf.mxu0
    %v1397 = vadd.f32 %v1303, %v1396
    %v1398 = vpop.f32.mrf.mxu0
    %1399 = vdwg.mxu0
    %v1401 = vunpack.c.l.b16 %v1297
    %v1402 = vpack.c.b16 %v1401, %v1401
    %1403 = vrot.lane.b32.xlu0 %v1402, 96
    %v1404 = vpop.permute.xlu0 %1403
    %v1406 = vsel %vm331, %v1297, 0
    %v1409 = vsel %vm331, %v1404, 0
    %1411 = vmatpush.bf16.xpose.msra.mxu0 0
    %1412 = vmatpush.bf16.xpose.msra.mxu0 0
    %1413 = vmatpush.bf16.xpose.msra.mxu0 0
    %1414 = vmatpush.bf16.xpose.msra.mxu0 0
    %1415 = vmatpush.bf16.xpose.msra.mxu0 0
    %1416 = vmatpush.bf16.xpose.msra.mxu0 0
    %1417 = vmatpush.bf16.xpose.msra.mxu0 0
    %1418 = vmatpush.bf16.xpose.msra.mxu0 %v1409
    %1419 = vmatmul.bf16.gmra.mxu0 %v1406
    %v1420 = vpop.f32.mrf.mxu0
    %v1421 = vadd.f32 %v1302, %v1420
    %v1422 = vpop.f32.mrf.mxu0
    %1423 = vdwg.mxu0
    %v1425 = vunpack.c.l.b16 %v1298
    %v1426 = vpack.c.b16 %v1425, %v1425
    %1427 = vrot.lane.b32.xlu0 %v1426, 96
    %v1428 = vpop.permute.xlu0 %1427
    %v1430 = vsel %vm331, %v1298, 0
    %v1433 = vsel %vm331, %v1428, 0
    %1435 = vmatpush.bf16.xpose.msra.mxu0 0
    %1436 = vmatpush.bf16.xpose.msra.mxu0 0
    %1437 = vmatpush.bf16.xpose.msra.mxu0 0
    %1438 = vmatpush.bf16.xpose.msra.mxu0 0
    %1439 = vmatpush.bf16.xpose.msra.mxu0 0
    %1440 = vmatpush.bf16.xpose.msra.mxu0 0
    %1441 = vmatpush.bf16.xpose.msra.mxu0 0
    %1442 = vmatpush.bf16.xpose.msra.mxu0 %v1433
    %1443 = vmatmul.bf16.gmra.mxu0 %v1430
    %v1444 = vpop.f32.mrf.mxu0
    %v1445 = vadd.f32 %v1303, %v1444
    %v1446 = vpop.f32.mrf.mxu0
    %1447 = vdwg.mxu0
    %v1449 = vunpack.c.l.b16 %v1299
    %v1450 = vpack.c.b16 %v1449, %v1449
    %1451 = vrot.lane.b32.xlu0 %v1450, 96
    %v1452 = vpop.permute.xlu0 %1451
    %v1454 = vsel %vm331, %v1299, 0
    %v1457 = vsel %vm331, %v1452, 0
    %1459 = vmatpush.bf16.xpose.msra.mxu0 0
    %1460 = vmatpush.bf16.xpose.msra.mxu0 0
    %1461 = vmatpush.bf16.xpose.msra.mxu0 0
    %1462 = vmatpush.bf16.xpose.msra.mxu0 0
    %1463 = vmatpush.bf16.xpose.msra.mxu0 0
    %1464 = vmatpush.bf16.xpose.msra.mxu0 0
    %1465 = vmatpush.bf16.xpose.msra.mxu0 0
    %1466 = vmatpush.bf16.xpose.msra.mxu0 %v1457
    %1467 = vmatmul.bf16.gmra.mxu0 %v1454
    %v1468 = vpop.f32.mrf.mxu0
    %v1469 = vadd.f32 %v1302, %v1468
    %v1470 = vpop.f32.mrf.mxu0
    %1471 = vdwg.mxu0
    %v1473 = vunpack.c.l.b16 %v1300
    %v1474 = vpack.c.b16 %v1473, %v1473
    %1475 = vrot.lane.b32.xlu0 %v1474, 96
    %v1476 = vpop.permute.xlu0 %1475
    %v1478 = vsel %vm331, %v1300, 0
    %v1481 = vsel %vm331, %v1476, 0
    %1483 = vmatpush.bf16.xpose.msra.mxu0 0
    %1484 = vmatpush.bf16.xpose.msra.mxu0 0
    %1485 = vmatpush.bf16.xpose.msra.mxu0 0
    %1486 = vmatpush.bf16.xpose.msra.mxu0 0
    %1487 = vmatpush.bf16.xpose.msra.mxu0 0
    %1488 = vmatpush.bf16.xpose.msra.mxu0 0
    %1489 = vmatpush.bf16.xpose.msra.mxu0 0
    %1490 = vmatpush.bf16.xpose.msra.mxu0 %v1481
    %1491 = vmatmul.bf16.gmra.mxu0 %v1478
    %v1492 = vpop.f32.mrf.mxu0
    %v1493 = vadd.f32 %v1303, %v1492
    %v1494 = vpop.f32.mrf.mxu0
    %1495 = vdwg.mxu0
    %v1496 = vsel %vm331, %v1325, -inf
    %1497 = vmax.xlane.f32.xlu0 %v1496
    %v1498 = vpop.xlane.xlu0 %1497
    %v1499 = vsel %vm331, %v1349, -inf
    %1500 = vmax.xlane.f32.xlu0 %v1499
    %v1501 = vpop.xlane.xlu0 %1500
    %v1502 = vsel %vm331, %v1373, -inf
    %1503 = vmax.xlane.f32.xlu0 %v1502
    %v1504 = vpop.xlane.xlu0 %1503
    %v1505 = vsel %vm331, %v1397, -inf
    %1506 = vmax.xlane.f32.xlu0 %v1505
    %v1507 = vpop.xlane.xlu0 %1506
    %v1508 = vsel %vm331, %v1421, -inf
    %1509 = vmax.xlane.f32.xlu0 %v1508
    %v1510 = vpop.xlane.xlu0 %1509
    %v1511 = vsel %vm331, %v1445, -inf
    %1512 = vmax.xlane.f32.xlu0 %v1511
    %v1513 = vpop.xlane.xlu0 %1512
    %v1514 = vsel %vm331, %v1469, -inf
    %1515 = vmax.xlane.f32.xlu0 %v1514
    %v1516 = vpop.xlane.xlu0 %1515
    %v1517 = vsel %vm331, %v1493, -inf
    %1518 = vmax.xlane.f32.xlu0 %v1517
    %v1519 = vpop.xlane.xlu0 %1518
    %v1520 = vsub.f32 %v1325, %v1498
    %v1521 = vsub.f32 %v1349, %v1501
    %v1522 = vsub.f32 %v1373, %v1504
    %v1523 = vsub.f32 %v1397, %v1507
    %v1524 = vsub.f32 %v1421, %v1510
    %v1525 = vsub.f32 %v1445, %v1513
    %v1526 = vsub.f32 %v1469, %v1516
    %v1527 = vsub.f32 %v1493, %v1519
    %v1528 = vmul.f32 %v1520, 1.442695
    %v1529 = vpow.pop %v1528
    %v1530 = vmul.f32 %v1521, 1.442695
    %v1531 = vpow.pop %v1530
    %v1532 = vmul.f32 %v1522, 1.442695
    %v1533 = vpow.pop %v1532
    %v1534 = vmul.f32 %v1523, 1.442695
    %v1535 = vpow.pop %v1534
    %v1536 = vmul.f32 %v1524, 1.442695
    %v1537 = vpow.pop %v1536
    %v1538 = vmul.f32 %v1525, 1.442695
    %v1539 = vpow.pop %v1538
    %v1540 = vmul.f32 %v1526, 1.442695
    %v1541 = vpow.pop %v1540
    %v1542 = vmul.f32 %v1527, 1.442695
    %v1543 = vpow.pop %v1542
    %v1544 = vsel %vm331, %v1529, 0.0
    %1545 = vadd.xlane.f32.xlu0 %v1544
    %v1546 = vpop.xlane.xlu0 %1545
    %v1547 = vsel %vm331, %v1531, 0.0
    %1548 = vadd.xlane.f32.xlu0 %v1547
    %v1549 = vpop.xlane.xlu0 %1548
    %v1550 = vsel %vm331, %v1533, 0.0
    %1551 = vadd.xlane.f32.xlu0 %v1550
    %v1552 = vpop.xlane.xlu0 %1551
    %v1553 = vsel %vm331, %v1535, 0.0
    %1554 = vadd.xlane.f32.xlu0 %v1553
    %v1555 = vpop.xlane.xlu0 %1554
    %v1556 = vsel %vm331, %v1537, 0.0
    %1557 = vadd.xlane.f32.xlu0 %v1556
    %v1558 = vpop.xlane.xlu0 %1557
    %v1559 = vsel %vm331, %v1539, 0.0
    %1560 = vadd.xlane.f32.xlu0 %v1559
    %v1561 = vpop.xlane.xlu0 %1560
    %v1562 = vsel %vm331, %v1541, 0.0
    %1563 = vadd.xlane.f32.xlu0 %v1562
    %v1564 = vpop.xlane.xlu0 %1563
    %v1565 = vsel %vm331, %v1543, 0.0
    %1566 = vadd.xlane.f32.xlu0 %v1565
    %v1567 = vpop.xlane.xlu0 %1566
    %v1568 = vrcp.pop %v1546
    %v1569 = vrcp.pop %v1549
    %v1570 = vrcp.pop %v1552
    %v1571 = vrcp.pop %v1555
    %v1572 = vrcp.pop %v1558
    %v1573 = vrcp.pop %v1561
    %v1574 = vrcp.pop %v1564
    %v1575 = vrcp.pop %v1567
    %v1576 = vmul.f32 %v1529, %v1568
    %v1577 = vmul.f32 %v1531, %v1569
    %v1578 = vmul.f32 %v1533, %v1570
    %v1579 = vmul.f32 %v1535, %v1571
    %v1580 = vmul.f32 %v1537, %v1572
    %v1581 = vmul.f32 %v1539, %v1573
    %v1582 = vmul.f32 %v1541, %v1574
    %v1583 = vmul.f32 %v1543, %v1575
    %v1584 = vpack.c.bf16 %v1576, %v1576
    %v1585 = vpack.c.bf16 %v1577, %v1577
    %v1586 = vpack.c.bf16 %v1578, %v1578
    %v1587 = vpack.c.bf16 %v1579, %v1579
    %v1588 = vpack.c.bf16 %v1580, %v1580
    %v1589 = vpack.c.bf16 %v1581, %v1581
    %v1590 = vpack.c.bf16 %v1582, %v1582
    %v1591 = vpack.c.bf16 %v1583, %v1583
    %1592 = vrot.lane.b32.xlu0 %v1306, 64
    %v1593 = vpop.permute.xlu0 %1592
    %v1595 = vsel %vm331, %v1584, 0
    %v1598 = vsel %vm620, %v1593, 0
    %1600 = vmatpush.bf16.msra.mxu0 0
    %1601 = vmatpush.bf16.msra.mxu0 0
    %1602 = vmatpush.bf16.msra.mxu0 0
    %1603 = vmatpush.bf16.msra.mxu0 0
    %1604 = vmatpush.bf16.msra.mxu0 0
    %1605 = vmatpush.bf16.msra.mxu0 0
    %1606 = vmatpush.bf16.msra.mxu0 0
    %1607 = vmatpush.bf16.msra.mxu0 %v1598
    %1608 = vmatmul.bf16.gmra.mxu0 %v1595
    %v1609 = vpop.f32.mrf.mxu0
    %v1610 = vadd.f32 0.0, %v1609
    %v1611 = vpop.f32.mrf.mxu0
    %1612 = vdwg.mxu0
    %1613 = vrot.lane.b32.xlu0 %v1330, 64
    %v1614 = vpop.permute.xlu0 %1613
    %v1616 = vsel %vm331, %v1585, 0
    %v1619 = vsel %vm620, %v1614, 0
    %1621 = vmatpush.bf16.msra.mxu0 0
    %1622 = vmatpush.bf16.msra.mxu0 0
    %1623 = vmatpush.bf16.msra.mxu0 0
    %1624 = vmatpush.bf16.msra.mxu0 0
    %1625 = vmatpush.bf16.msra.mxu0 0
    %1626 = vmatpush.bf16.msra.mxu0 0
    %1627 = vmatpush.bf16.msra.mxu0 0
    %1628 = vmatpush.bf16.msra.mxu0 %v1619
    %1629 = vmatmul.bf16.gmra.mxu0 %v1616
    %v1630 = vpop.f32.mrf.mxu0
    %v1631 = vadd.f32 0.0, %v1630
    %v1632 = vpop.f32.mrf.mxu0
    %1633 = vdwg.mxu0
    %1634 = vrot.lane.b32.xlu0 %v1354, 64
    %v1635 = vpop.permute.xlu0 %1634
    %v1637 = vsel %vm331, %v1586, 0
    %v1640 = vsel %vm620, %v1635, 0
    %1642 = vmatpush.bf16.msra.mxu0 0
    %1643 = vmatpush.bf16.msra.mxu0 0
    %1644 = vmatpush.bf16.msra.mxu0 0
    %1645 = vmatpush.bf16.msra.mxu0 0
    %1646 = vmatpush.bf16.msra.mxu0 0
    %1647 = vmatpush.bf16.msra.mxu0 0
    %1648 = vmatpush.bf16.msra.mxu0 0
    %1649 = vmatpush.bf16.msra.mxu0 %v1640
    %1650 = vmatmul.bf16.gmra.mxu0 %v1637
    %v1651 = vpop.f32.mrf.mxu0
    %v1652 = vadd.f32 0.0, %v1651
    %v1653 = vpop.f32.mrf.mxu0
    %1654 = vdwg.mxu0
    %1655 = vrot.lane.b32.xlu0 %v1378, 64
    %v1656 = vpop.permute.xlu0 %1655
    %v1658 = vsel %vm331, %v1587, 0
    %v1661 = vsel %vm620, %v1656, 0
    %1663 = vmatpush.bf16.msra.mxu0 0
    %1664 = vmatpush.bf16.msra.mxu0 0
    %1665 = vmatpush.bf16.msra.mxu0 0
    %1666 = vmatpush.bf16.msra.mxu0 0
    %1667 = vmatpush.bf16.msra.mxu0 0
    %1668 = vmatpush.bf16.msra.mxu0 0
    %1669 = vmatpush.bf16.msra.mxu0 0
    %1670 = vmatpush.bf16.msra.mxu0 %v1661
    %1671 = vmatmul.bf16.gmra.mxu0 %v1658
    %v1672 = vpop.f32.mrf.mxu0
    %v1673 = vadd.f32 0.0, %v1672
    %v1674 = vpop.f32.mrf.mxu0
    %1675 = vdwg.mxu0
    %1676 = vrot.lane.b32.xlu0 %v1402, 64
    %v1677 = vpop.permute.xlu0 %1676
    %v1679 = vsel %vm331, %v1588, 0
    %v1682 = vsel %vm620, %v1677, 0
    %1684 = vmatpush.bf16.msra.mxu0 0
    %1685 = vmatpush.bf16.msra.mxu0 0
    %1686 = vmatpush.bf16.msra.mxu0 0
    %1687 = vmatpush.bf16.msra.mxu0 0
    %1688 = vmatpush.bf16.msra.mxu0 0
    %1689 = vmatpush.bf16.msra.mxu0 0
    %1690 = vmatpush.bf16.msra.mxu0 0
    %1691 = vmatpush.bf16.msra.mxu0 %v1682
    %1692 = vmatmul.bf16.gmra.mxu0 %v1679
    %v1693 = vpop.f32.mrf.mxu0
    %v1694 = vadd.f32 0.0, %v1693
    %v1695 = vpop.f32.mrf.mxu0
    %1696 = vdwg.mxu0
    %1697 = vrot.lane.b32.xlu0 %v1426, 64
    %v1698 = vpop.permute.xlu0 %1697
    %v1700 = vsel %vm331, %v1589, 0
    %v1703 = vsel %vm620, %v1698, 0
    %1705 = vmatpush.bf16.msra.mxu0 0
    %1706 = vmatpush.bf16.msra.mxu0 0
    %1707 = vmatpush.bf16.msra.mxu0 0
    %1708 = vmatpush.bf16.msra.mxu0 0
    %1709 = vmatpush.bf16.msra.mxu0 0
    %1710 = vmatpush.bf16.msra.mxu0 0
    %1711 = vmatpush.bf16.msra.mxu0 0
    %1712 = vmatpush.bf16.msra.mxu0 %v1703
    %1713 = vmatmul.bf16.gmra.mxu0 %v1700
    %v1714 = vpop.f32.mrf.mxu0
    %v1715 = vadd.f32 0.0, %v1714
    %v1716 = vpop.f32.mrf.mxu0
    %1717 = vdwg.mxu0
    %1718 = vrot.lane.b32.xlu0 %v1450, 64
    %v1719 = vpop.permute.xlu0 %1718
    %v1721 = vsel %vm331, %v1590, 0
    %v1724 = vsel %vm620, %v1719, 0
    %1726 = vmatpush.bf16.msra.mxu0 0
    %1727 = vmatpush.bf16.msra.mxu0 0
    %1728 = vmatpush.bf16.msra.mxu0 0
    %1729 = vmatpush.bf16.msra.mxu0 0
    %1730 = vmatpush.bf16.msra.mxu0 0
    %1731 = vmatpush.bf16.msra.mxu0 0
    %1732 = vmatpush.bf16.msra.mxu0 0
    %1733 = vmatpush.bf16.msra.mxu0 %v1724
    %1734 = vmatmul.bf16.gmra.mxu0 %v1721
    %v1735 = vpop.f32.mrf.mxu0
    %v1736 = vadd.f32 0.0, %v1735
    %v1737 = vpop.f32.mrf.mxu0
    %1738 = vdwg.mxu0
    %1739 = vrot.lane.b32.xlu0 %v1474, 64
    %v1740 = vpop.permute.xlu0 %1739
    %v1742 = vsel %vm331, %v1591, 0
    %v1745 = vsel %vm620, %v1740, 0
    %1747 = vmatpush.bf16.msra.mxu0 0
    %1748 = vmatpush.bf16.msra.mxu0 0
    %1749 = vmatpush.bf16.msra.mxu0 0
    %1750 = vmatpush.bf16.msra.mxu0 0
    %1751 = vmatpush.bf16.msra.mxu0 0
    %1752 = vmatpush.bf16.msra.mxu0 0
    %1753 = vmatpush.bf16.msra.mxu0 0
    %1754 = vmatpush.bf16.msra.mxu0 %v1745
    %1755 = vmatmul.bf16.gmra.mxu0 %v1742
    %v1756 = vpop.f32.mrf.mxu0
    %v1757 = vadd.f32 0.0, %v1756
    %v1758 = vpop.f32.mrf.mxu0
    %1759 = vdwg.mxu0
    %1762 = vrot.lane.b32.xlu0 %v1652, 8
    %v1763 = vpop.permute.xlu0 %1762
    %1764 = vrot.lane.b32.xlu0 %v1673, 8
    %v1765 = vpop.permute.xlu0 %1764
    %1770 = vrot.lane.b32.xlu0 %v1694, 16
    %v1771 = vpop.permute.xlu0 %1770
    %1772 = vrot.lane.b32.xlu0 %v1715, 16
    %v1773 = vpop.permute.xlu0 %1772
    %1778 = vrot.lane.b32.xlu0 %v1736, 24
    %v1779 = vpop.permute.xlu0 %1778
    %1780 = vrot.lane.b32.xlu0 %v1757, 24
    %v1781 = vpop.permute.xlu0 %1780
    %v1784 = vsel %vm331, %v1610, %v1763
    %v1785 = vsel %vm331, %v1631, %v1765
    %v1786 = vsel %vm128, %v1784, %v1771
    %v1787 = vsel %vm128, %v1785, %v1773
    %v1788 = vsel %vm812, %v1786, %v1779
    %v1789 = vsel %vm812, %v1787, %v1781
    %v1790 = vpack.c.bf16 %v1789, %v1788
    %s1791 = scalar_lea.vmem %s4, 16
    %v1792 = vld [vmem:[%s1791] sm:$0xf]
    %v1793 = vld [vmem:[%s1791 + $0x4] sm:$0xf]
    %v1794 = vld [vmem:[%s1791 + $0x8] sm:$0xf]
    %v1795 = vld [vmem:[%s1791 + $0xc] sm:$0xf]
    %s1796 = scalar_lea.vmem %s5, 1
    %v1797 = vld [vmem:[%s1796] sm:$0x1]
    %v1799 = vperm.slane %v1797, 0
    %v1805 = vunpack.c.l.b16 %v1792
    %v1806 = vunpack.c.l.b16 %v1793
    %v1807 = vunpack.c.l.b16 %v1794
    %v1808 = vunpack.c.l.b16 %v1795
    %v1809 = vpack.c.b16 %v1806, %v1805
    %v1810 = vpack.c.b16 %v1808, %v1807
    %v1814 = vsel %vm276, %v1790, 0
    %1816 = vmatpush.bf16.msra.mxu0 0
    %1817 = vmatpush.bf16.msra.mxu0 0
    %1818 = vmatpush.bf16.msra.mxu0 0
    %1819 = vmatpush.bf16.msra.mxu0 0
    %1820 = vmatpush.bf16.msra.mxu0 0
    %1821 = vmatpush.bf16.msra.mxu0 0
    %1822 = vmatpush.bf16.msra.mxu0 %v1810
    %1823 = vmatpush.bf16.msra.mxu0 %v1809
    %1824 = vmatmul.bf16.gmra.mxu0 %v1814
    %v1825 = vpop.f32.mrf.mxu0
    %v1826 = vadd.f32 %v1799, %v1825
    %v1827 = vpop.f32.mrf.mxu0
    %v1828 = vadd.f32 %v1799, %v1827
    %1829 = vdwg.mxu0
    %v1838 = vrot.slane %v1577, 7
    %v1839 = vsel %vm862, %v1838, %v1576
    %v1840 = vrot.slane %v1578, 6
    %v1841 = vsel %vm865, %v1840, %v1839
    %v1842 = vrot.slane %v1579, 5
    %v1843 = vsel %vm868, %v1842, %v1841
    %v1844 = vrot.slane %v1580, 4
    %v1845 = vsel %vm871, %v1844, %v1843
    %v1846 = vrot.slane %v1581, 3
    %v1847 = vsel %vm874, %v1846, %v1845
    %v1848 = vrot.slane %v1582, 2
    %v1849 = vsel %vm877, %v1848, %v1847
    %v1850 = vrot.slane %v1583, 1
    %v1851 = vsel %vm880, %v1850, %v1849
    %v1853 = vrot.slane %v1576, 1
    %v1854 = vsel %vm862, %v1577, %v1853
    %v1855 = vrot.slane %v1578, 7
    %v1856 = vsel %vm865, %v1855, %v1854
    %v1857 = vrot.slane %v1579, 6
    %v1858 = vsel %vm868, %v1857, %v1856
    %v1859 = vrot.slane %v1580, 5
    %v1860 = vsel %vm871, %v1859, %v1858
    %v1861 = vrot.slane %v1581, 4
    %v1862 = vsel %vm874, %v1861, %v1860
    %v1863 = vrot.slane %v1582, 3
    %v1864 = vsel %vm877, %v1863, %v1862
    %v1865 = vrot.slane %v1583, 2
    %v1866 = vsel %vm880, %v1865, %v1864
    %1867 = vrot.lane.b32.xlu0 %v1866, 8
    %v1868 = vpop.permute.xlu0 %1867
    %v1870 = vrot.slane %v1576, 2
    %v1871 = vrot.slane %v1577, 1
    %v1872 = vsel %vm862, %v1871, %v1870
    %v1873 = vsel %vm865, %v1578, %v1872
    %v1874 = vrot.slane %v1579, 7
    %v1875 = vsel %vm868, %v1874, %v1873
    %v1876 = vrot.slane %v1580, 6
    %v1877 = vsel %vm871, %v1876, %v1875
    %v1878 = vrot.slane %v1581, 5
    %v1879 = vsel %vm874, %v1878, %v1877
    %v1880 = vrot.slane %v1582, 4
    %v1881 = vsel %vm877, %v1880, %v1879
    %v1882 = vrot.slane %v1583, 3
    %v1883 = vsel %vm880, %v1882, %v1881
    %1884 = vrot.lane.b32.xlu0 %v1883, 16
    %v1885 = vpop.permute.xlu0 %1884
    %v1887 = vrot.slane %v1576, 3
    %v1888 = vrot.slane %v1577, 2
    %v1889 = vsel %vm862, %v1888, %v1887
    %v1890 = vrot.slane %v1578, 1
    %v1891 = vsel %vm865, %v1890, %v1889
    %v1892 = vsel %vm868, %v1579, %v1891
    %v1893 = vrot.slane %v1580, 7
    %v1894 = vsel %vm871, %v1893, %v1892
    %v1895 = vrot.slane %v1581, 6
    %v1896 = vsel %vm874, %v1895, %v1894
    %v1897 = vrot.slane %v1582, 5
    %v1898 = vsel %vm877, %v1897, %v1896
    %v1899 = vrot.slane %v1583, 4
    %v1900 = vsel %vm880, %v1899, %v1898
    %1901 = vrot.lane.b32.xlu0 %v1900, 24
    %v1902 = vpop.permute.xlu0 %1901
    %v1904 = vrot.slane %v1576, 4
    %v1905 = vrot.slane %v1577, 3
    %v1906 = vsel %vm862, %v1905, %v1904
    %v1907 = vrot.slane %v1578, 2
    %v1908 = vsel %vm865, %v1907, %v1906
    %v1909 = vrot.slane %v1579, 1
    %v1910 = vsel %vm868, %v1909, %v1908
    %v1911 = vsel %vm871, %v1580, %v1910
    %v1912 = vrot.slane %v1581, 7
    %v1913 = vsel %vm874, %v1912, %v1911
    %v1914 = vrot.slane %v1582, 6
    %v1915 = vsel %vm877, %v1914, %v1913
    %v1916 = vrot.slane %v1583, 5
    %v1917 = vsel %vm880, %v1916, %v1915
    %1918 = vrot.lane.b32.xlu0 %v1917, 32
    %v1919 = vpop.permute.xlu0 %1918
    %v1921 = vrot.slane %v1576, 5
    %v1922 = vrot.slane %v1577, 4
    %v1923 = vsel %vm862, %v1922, %v1921
    %v1924 = vrot.slane %v1578, 3
    %v1925 = vsel %vm865, %v1924, %v1923
    %v1926 = vrot.slane %v1579, 2
    %v1927 = vsel %vm868, %v1926, %v1925
    %v1928 = vrot.slane %v1580, 1
    %v1929 = vsel %vm871, %v1928, %v1927
    %v1930 = vsel %vm874, %v1581, %v1929
    %v1931 = vrot.slane %v1582, 7
    %v1932 = vsel %vm877, %v1931, %v1930
    %v1933 = vrot.slane %v1583, 6
    %v1934 = vsel %vm880, %v1933, %v1932
    %1935 = vrot.lane.b32.xlu0 %v1934, 40
    %v1936 = vpop.permute.xlu0 %1935
    %v1938 = vrot.slane %v1576, 6
    %v1939 = vrot.slane %v1577, 5
    %v1940 = vsel %vm862, %v1939, %v1938
    %v1941 = vrot.slane %v1578, 4
    %v1942 = vsel %vm865, %v1941, %v1940
    %v1943 = vrot.slane %v1579, 3
    %v1944 = vsel %vm868, %v1943, %v1942
    %v1945 = vrot.slane %v1580, 2
    %v1946 = vsel %vm871, %v1945, %v1944
    %v1947 = vrot.slane %v1581, 1
    %v1948 = vsel %vm874, %v1947, %v1946
    %v1949 = vsel %vm877, %v1582, %v1948
    %v1950 = vrot.slane %v1583, 7
    %v1951 = vsel %vm880, %v1950, %v1949
    %1952 = vrot.lane.b32.xlu0 %v1951, 48
    %v1953 = vpop.permute.xlu0 %1952
    %v1955 = vrot.slane %v1576, 7
    %v1956 = vrot.slane %v1577, 6
    %v1957 = vsel %vm862, %v1956, %v1955
    %v1958 = vrot.slane %v1578, 5
    %v1959 = vsel %vm865, %v1958, %v1957
    %v1960 = vrot.slane %v1579, 4
    %v1961 = vsel %vm868, %v1960, %v1959
    %v1962 = vrot.slane %v1580, 3
    %v1963 = vsel %vm871, %v1962, %v1961
    %v1964 = vrot.slane %v1581, 2
    %v1965 = vsel %vm874, %v1964, %v1963
    %v1966 = vrot.slane %v1582, 1
    %v1967 = vsel %vm877, %v1966, %v1965
    %v1968 = vsel %vm880, %v1583, %v1967
    %1969 = vrot.lane.b32.xlu0 %v1968, 56
    %v1970 = vpop.permute.xlu0 %1969
    %v1972 = vsel %vm331, %v1851, %v1868
    %v1973 = vsel %vm128, %v1972, %v1885
    %v1974 = vsel %vm812, %v1973, %v1902
    %v1975 = vsel %vm276, %v1974, %v1919
    %v1976 = vsel %vm1006, %v1975, %v1936
    %v1977 = vsel %vm1008, %v1976, %v1953
    %v1978 = vsel %vm1010, %v1977, %v1970
    %v1980 = vrot.slane %v1978, 2
    %1981 = vrot.lane.b32.xlu0 %v1980, 64
    %v1982 = vpop.permute.xlu0 %1981
    %v1984 = vrot.slane %v1978, 4
    %v1986 = vrot.slane %v1978, 6
    %1987 = vrot.lane.b32.xlu0 %v1986, 64
    %v1988 = vpop.permute.xlu0 %1987
    %v1990 = vsel %vm1023, %v1978, %v1982
    %v1991 = vsel %vm1023, %v1984, %v1988
    %v1994 = vrot.slane %v1991, 6
    %v1995 = vsel %vm1029, %v1990, %v1994
    %s1997 = scalar_lea.vmem [#allocation13], 4
    %1998 = vst [vmem:[%s1997] sm:$0xf] %v1995
    %v1999 = vadd.f32 %v1230, %v1826
    %v2000 = vadd.f32 %v1231, %v1828
    %v2001 = vsel %vm276, %v1999, 0.0
    %2002 = vadd.xlane.f32.xlu0 %v2001
    %v2003 = vpop.xlane.xlu0 %2002
    %v2004 = vsel %vm276, %v2000, 0.0
    %2005 = vadd.xlane.f32.xlu0 %v2004
    %v2006 = vpop.xlane.xlu0 %2005
    %v2007 = vmul.f32 %v2003, %v1047
    %v2008 = vmul.f32 %v2006, %v1047
    %v2009 = vsub.f32 %v1999, %v2007
    %v2010 = vsub.f32 %v2000, %v2008
    %v2011 = vmul.f32 %v2009, %v2009
    %v2012 = vmul.f32 %v2010, %v2010
    %v2013 = vsel %vm276, %v2011, 0.0
    %2014 = vadd.xlane.f32.xlu0 %v2013
    %v2015 = vpop.xlane.xlu0 %2014
    %v2016 = vsel %vm276, %v2012, 0.0
    %2017 = vadd.xlane.f32.xlu0 %v2016
    %v2018 = vpop.xlane.xlu0 %2017
    %v2019 = vmul.f32 %v2015, %v1047
    %v2020 = vmul.f32 %v2018, %v1047
    %v2021 = vadd.f32 %v2019, 1e-05
    %v2022 = vadd.f32 %v2020, 1e-05
    %v2023 = vrsqrt.pop %v2021
    %v2024 = vmul.f32 %v2023, %v2021
    %v2025 = vmul.f32 %v2024, %v2023
    %v2026 = vmul.f32 0.5, %v2025
    %v2027 = vsub.f32 1.5, %v2026
    %v2028 = vmul.f32 %v2023, %v2027
    %vm2029 = vweird.f32 %v2021
    %vm2030 = vweird.f32 %v2023
    %vm2031 = vmor %vm2029, %vm2030
    %v2032 = vsel %vm2031, %v2023, %v2028
    %v2033 = vrsqrt.pop %v2022
    %v2034 = vmul.f32 %v2033, %v2022
    %v2035 = vmul.f32 %v2034, %v2033
    %v2036 = vmul.f32 0.5, %v2035
    %v2037 = vsub.f32 1.5, %v2036
    %v2038 = vmul.f32 %v2033, %v2037
    %vm2039 = vweird.f32 %v2022
    %vm2040 = vweird.f32 %v2033
    %vm2041 = vmor %vm2039, %vm2040
    %v2042 = vsel %vm2041, %v2033, %v2038
    %v2043 = vmul.f32 %v2009, %v2032
    %v2044 = vmul.f32 %v2010, %v2042
    %v2045 = vmul.f32 %v2043, %v1087
    %v2046 = vmul.f32 %v2044, %v1087
    %v2047 = vadd.f32 %v2045, %v1092
    %v2048 = vadd.f32 %v2046, %v1092
    %v2049 = vpack.c.bf16 %v2048, %v2047
    %v2051 = vsel %vm276, %v2049, 0
    %2053 = vmatpush.bf16.msra.mxu0 0
    %2054 = vmatpush.bf16.msra.mxu0 0
    %2055 = vmatpush.bf16.msra.mxu0 0
    %2056 = vmatpush.bf16.msra.mxu0 0
    %2057 = vmatpush.bf16.msra.mxu0 0
    %2058 = vmatpush.bf16.msra.mxu0 0
    %2059 = vmatpush.bf16.msra.mxu0 %v1109
    %2060 = vmatpush.bf16.msra.mxu0 %v1108
    %2061 = vmatmul.bf16.gmra.mxu0 %v2051
    %v2062 = vpop.f32.mrf.mxu0
    %v2063 = vadd.f32 %v1098, %v2062
    %v2064 = vpop.f32.mrf.mxu0
    %v2065 = vadd.f32 %v1098, %v2064
    %2066 = vdwg.mxu0
    %v2067 = vmax.f32 %v2063, 0.0
    %v2068 = vmax.f32 %v2065, 0.0
    %v2069 = vpack.c.bf16 %v2068, %v2067
    %v2071 = vsel %vm1023, %v2069, 0
    %2073 = vmatpush.bf16.msra.mxu0 0
    %2074 = vmatpush.bf16.msra.mxu0 0
    %2075 = vmatpush.bf16.msra.mxu0 0
    %2076 = vmatpush.bf16.msra.mxu0 0
    %2077 = vmatpush.bf16.msra.mxu0 %v1154
    %2078 = vmatpush.bf16.msra.mxu0 %v1153
    %2079 = vmatpush.bf16.msra.mxu0 %v1152
    %2080 = vmatpush.bf16.msra.mxu0 %v1151
    %2081 = vmatmul.bf16.gmra.mxu0 %v2071
    %v2082 = vpop.f32.mrf.mxu0
    %v2083 = vadd.f32 %v1133, %v2082
    %v2084 = vpop.f32.mrf.mxu0
    %v2085 = vadd.f32 %v1133, %v2084
    %2086 = vdwg.mxu0
    %v2087 = vadd.f32 %v2047, %v2083
    %v2088 = vadd.f32 %v2048, %v2085
    %v2089 = vsel %vm276, %v2087, 0.0
    %2090 = vadd.xlane.f32.xlu0 %v2089
    %v2091 = vpop.xlane.xlu0 %2090
    %v2092 = vsel %vm276, %v2088, 0.0
    %2093 = vadd.xlane.f32.xlu0 %v2092
    %v2094 = vpop.xlane.xlu0 %2093
    %v2095 = vmul.f32 %v2091, %v1047
    %v2096 = vmul.f32 %v2094, %v1047
    %v2097 = vsub.f32 %v2087, %v2095
    %v2098 = vsub.f32 %v2088, %v2096
    %v2099 = vmul.f32 %v2097, %v2097
    %v2100 = vmul.f32 %v2098, %v2098
    %v2101 = vsel %vm276, %v2099, 0.0
    %2102 = vadd.xlane.f32.xlu0 %v2101
    %v2103 = vpop.xlane.xlu0 %2102
    %v2104 = vsel %vm276, %v2100, 0.0
    %2105 = vadd.xlane.f32.xlu0 %v2104
    %v2106 = vpop.xlane.xlu0 %2105
    %v2107 = vmul.f32 %v2103, %v1047
    %v2108 = vmul.f32 %v2106, %v1047
    %v2109 = vadd.f32 %v2107, 1e-05
    %v2110 = vadd.f32 %v2108, 1e-05
    %v2111 = vrsqrt.pop %v2109
    %v2112 = vmul.f32 %v2111, %v2109
    %v2113 = vmul.f32 %v2112, %v2111
    %v2114 = vmul.f32 0.5, %v2113
    %v2115 = vsub.f32 1.5, %v2114
    %v2116 = vmul.f32 %v2111, %v2115
    %vm2117 = vweird.f32 %v2109
    %vm2118 = vweird.f32 %v2111
    %vm2119 = vmor %vm2117, %vm2118
    %v2120 = vsel %vm2119, %v2111, %v2116
    %v2121 = vrsqrt.pop %v2110
    %v2122 = vmul.f32 %v2121, %v2110
    %v2123 = vmul.f32 %v2122, %v2121
    %v2124 = vmul.f32 0.5, %v2123
    %v2125 = vsub.f32 1.5, %v2124
    %v2126 = vmul.f32 %v2121, %v2125
    %vm2127 = vweird.f32 %v2110
    %vm2128 = vweird.f32 %v2121
    %vm2129 = vmor %vm2127, %vm2128
    %v2130 = vsel %vm2129, %v2121, %v2126
    %v2131 = vmul.f32 %v2097, %v2120
    %v2132 = vmul.f32 %v2098, %v2130
    %v2133 = vmul.f32 %v2131, %v1223
    %v2134 = vmul.f32 %v2132, %v1223
    %v2135 = vadd.f32 %v2133, %v1228
    %v2136 = vadd.f32 %v2134, %v1228
    %v2137 = vsel %vm276, %v2135, 0.0
    %v2138 = vrot.slane %v2137, 4
    %v2139 = vadd.f32 %v2137, %v2138
    %v2140 = vrot.slane %v2139, 2
    %v2141 = vadd.f32 %v2139, %v2140
    %v2142 = vrot.slane %v2141, 1
    %v2143 = vadd.f32 %v2141, %v2142
    %v2144 = vsel %vm276, %v2136, 0.0
    %v2145 = vrot.slane %v2144, 4
    %v2146 = vadd.f32 %v2144, %v2145
    %v2147 = vrot.slane %v2146, 2
    %v2148 = vadd.f32 %v2146, %v2147
    %v2149 = vrot.slane %v2148, 1
    %v2150 = vadd.f32 %v2148, %v2149
    %v2151 = vrcp.pop 8.0
    %v2152 = vmul.f32 8.0, %v2151
    %v2153 = vsub.f32 1.0, %v2152
    %v2154 = vmul.f32 %v2151, %v2153
    %v2155 = vadd.f32 %v2151, %v2154
    %vm2156 = vweird.f32 %v2151
    %v2157 = vsel %vm2156, %v2151, %v2155
    %v2158 = vmul.f32 %v2143, %v2157
    %v2159 = vmul.f32 %v2150, %v2157
    %v2162 = vsel %vm862, %v2159, %v2158
    %vm2164 = vcmask 254976
    %2165 = vst.msk [vmem:[#allocation11] sm:$0x3] %vm2164, %v2162
    %v2166 = vpack.c.bf16 %v2158, %v2158
    %v2167 = vpack.c.bf16 %v2159, %v2159
    %v2168 = vld [vmem:[%s15] sm:$0xf]
    %v2169 = vld [vmem:[%s15 + $0x4] sm:$0xf]
    %v2170 = vld [vmem:[%s15 + $0x8] sm:$0xf]
    %v2171 = vld [vmem:[%s15 + $0xc] sm:$0xf]
    %v2172 = vld [vmem:[%s16] sm:$0x1]
    %v2174 = vperm.slane %v2172, 0
    %v2178 = vunpack.c.l.b16 %v2166
    %v2179 = vunpack.c.l.b16 %v2167
    %v2180 = vsel %vm862, %v2179, %v2178
    %v2181 = vpack.c.b16 %v2180, %v2180
    %v2186 = vunpack.c.l.b16 %v2168
    %v2187 = vunpack.c.l.b16 %v2169
    %v2188 = vunpack.c.l.b16 %v2170
    %v2189 = vunpack.c.l.b16 %v2171
    %v2190 = vpack.c.b16 %v2187, %v2186
    %v2191 = vpack.c.b16 %v2189, %v2188
    %v2195 = vsel %vm276, %v2181, 0
    %2197 = vmatpush.bf16.msra.mxu0 0
    %2198 = vmatpush.bf16.msra.mxu0 0
    %2199 = vmatpush.bf16.msra.mxu0 0
    %2200 = vmatpush.bf16.msra.mxu0 0
    %2201 = vmatpush.bf16.msra.mxu0 0
    %2202 = vmatpush.bf16.msra.mxu0 0
    %2203 = vmatpush.bf16.msra.mxu0 %v2191
    %2204 = vmatpush.bf16.msra.mxu0 %v2190
    %2205 = vmatmul.bf16.gmra.mxu0 %v2195
    %v2206 = vpop.f32.mrf.mxu0
    %v2207 = vadd.f32 %v2174, %v2206
    %v2208 = vpop.f32.mrf.mxu0
    %2209 = vdwg.mxu0
    %vm2210 = vcmask 58368
    %2211 = vst.msk [vmem:[#allocation10] sm:$0x3] %vm2210, %v2207
    // Predicated region
    $region86: #{tpu_custom_call.1} parent=1 // pred_check
      _
    $region87: #{tpu_custom_call.1} parent=1 // pred_check_branch
      %2213 = sbr.rel (0) target = $region89
    $region88: #{tpu_custom_call.1} parent=1 // pred_region
      %2215 = vsyncadd [#allocation4], 0
      %s2217 = sshll.u32 [#allocation10], 4
      %s2218 = int_to_ptr.vmem [resolvable:$true] %s2217
      %s2219 = sshll.u32 %s17, 4
      %s2220 = int_to_ptr.hbm [resolvable:$true] %s2219
      %2222 = dma.vmem_to_hbm [thread:$0]  %s2218, 32, %s2220, [#allocation4]
    $region89: #{tpu_custom_call.1} parent=1 // pred_fallthru
      _
    // Predicated region
    $region90: #{tpu_custom_call.1} parent=1 // pred_check
      _
    $region91: #{tpu_custom_call.1} parent=1 // pred_check_branch
      %2224 = sbr.rel (0) target = $region93
    $region92: #{tpu_custom_call.1} parent=1 // pred_region
      %2226 = vsyncadd [#allocation12], 0
      %s2228 = sshll.u32 [#allocation11], 4
      %s2229 = int_to_ptr.vmem [resolvable:$true] %s2228
      %s2230 = sshll.u32 %s18, 4
      %s2231 = int_to_ptr.hbm [resolvable:$true] %s2230
      %2233 = dma.vmem_to_hbm [thread:$0]  %s2229, 32, %s2231, [#allocation12]
    $region93: #{tpu_custom_call.1} parent=1 // pred_fallthru
      _
    // Predicated region
    $region94: #{tpu_custom_call.1} parent=1 // pred_check
      _
    $region95: #{tpu_custom_call.1} parent=1 // pred_check_branch
      %2235 = sbr.rel (0) target = $region97
    $region96: #{tpu_custom_call.1} parent=1 // pred_region
      %2237 = vsyncadd [#allocation12], 0
      %s2238 = sshll.u32 [#allocation13], 4
      %s2239 = int_to_ptr.vmem [resolvable:$true] %s2238
      %s2240 = sshll.u32 %s19, 4
      %s2241 = int_to_ptr.hbm [resolvable:$true] %s2240
      %2246 = dma.vmem_to_hbm [thread:$0]  %s2239, 128, %s2241, [#allocation12], 64, 64, 4
    $region97: #{tpu_custom_call.1} parent=1 // pred_fallthru
      _
    // Predicated region
    $region98: #{tpu_custom_call.1} parent=1 // pred_check
      _
    $region99: #{tpu_custom_call.1} parent=1 // pred_check_branch
      %2248 = sbr.rel (0) target = $region101
    $region100: #{tpu_custom_call.1} parent=1 // pred_region
      %2250 = dma.done [#allocation4], 32
    $region101: #{tpu_custom_call.1} parent=1 // pred_fallthru
      _
    // Predicated region
    $region102: #{tpu_custom_call.1} parent=1 // pred_check
      _
    $region103: #{tpu_custom_call.1} parent=1 // pred_check_branch
      %2252 = sbr.rel (0) target = $region105
    $region104: #{tpu_custom_call.1} parent=1 // pred_region
      %2254 = dma.done [#allocation12], 32
    $region105: #{tpu_custom_call.1} parent=1 // pred_fallthru
      _
    // Predicated region
    $region106: #{tpu_custom_call.1} parent=1 // pred_check
      _
    $region107: #{tpu_custom_call.1} parent=1 // pred_check_branch
      %2256 = sbr.rel (0) target = $region109
    $region108: #{tpu_custom_call.1} parent=1 // pred_region
      %2258 = dma.done [#allocation12], 128
    $region109: #{tpu_custom_call.1} parent=1 // pred_fallthru
      _
    %2259 = vsyncpa [#allocation3], 1
    %2260 = vsyncpa [#allocation7], 1
    %2261 = vsyncpa [#allocation4], 1
    %2262 = vsyncpa [#allocation12], 1
    %2263 = vsyncpa [#allocation5], 1

</llo_original>
